<compile_context>
chip_gen: v6e
topology: v6e:2x2x1
jax: 0.10.0
libtpu: 0.0.40
codegen_flags: <defaults>
</compile_context>

<pallas_src>
import jax
import jax.numpy as jnp
from jax import lax
from jax.experimental import pallas as pl
from jax.experimental.pallas import tpu as pltpu

# ----------------------------- config (small, consistent with the module) -------------
B = 2           # batch
S = 8           # sequence length (power of 2: shifts/masks instead of int div/rem)
BS = B * S
H = 32          # hidden_dim (PyTorch default 768, scaled down)
H2 = H // 2
NB = 10         # num_behaviors
INTER = 64      # FFN intermediate size
LAYERS = 2
VOCAB = 64
EMB_ROWS = VOCAB + S        # fused [token | position] embedding table rows

assert S & (S - 1) == 0
_LOG2_S = S.bit_length() - 1

# packed lane-dense output: [0:NB)=probs, [NB]=risk, [NB+1:NB+1+H)=pooled
OUT_W = 128
_RISK_OFF = NB
_POOL_OFF = NB + 1

# bias slab rows: per layer 3 rows, then embedding/pooler row, then head-bias row
_R_EMB = 3 * LAYERS         # [emb_gamma | emb_beta | bp | pad]
_R_HEAD = 3 * LAYERS + 1    # [bc1 | br1 | bc2 | br2 | pad]
_BIAS_ROWS = 3 * LAYERS + 2  # == 8  -> exactly one (8,128) f32 tile

VMEM_SPEC = pl.BlockSpec(memory_space=pltpu.MemorySpace.VMEM)


# ----------------------------- in-kernel helpers ---------------------------------------
def _layer_norm(x, gamma, beta, eps=1e-12):
    mu = jnp.mean(x, axis=-1, keepdims=True)
    var = jnp.mean((x - mu) ** 2, axis=-1, keepdims=True)
    return (x - mu) * jax.lax.rsqrt(var + eps) * gamma + beta


def _gelu(x):
    # TODO(synk): tanh-approximation GELU; HF BERT uses exact erf GELU (tiny numeric delta).
    c = 0.7978845608028654  # sqrt(2/pi)
    return 0.5 * x * (1.0 + jnp.tanh(c * (x + 0.044715 * x * x * x)))


def _mxu(a, w_bf16):
    # activation cast per-use; weights are already bf16; f32 accumulate on the MXU.
    return jnp.dot(a.astype(jnp.bfloat16), w_bf16, preferred_element_type=jnp.float32)


# ----------------------------- fully fused forward kernel ------------------------------
def fused_forward_kernel(ids_ref, mask_ref, emb_w_ref, w_attn_ref, w_ffn_ref,
                         w_heads_ref, bias_ref, out_ref):
    f32 = jnp.float32
    bf16 = jnp.bfloat16

    out_ref[...] = jnp.zeros(out_ref.shape, out_ref.dtype)

    # ---- fused token+position embedding as ONE one-hot MXU matmul ---------------------
    col = lax.broadcasted_iota(jnp.int32, (BS, EMB_ROWS), 1)
    row = lax.broadcasted_iota(jnp.int32, (BS, EMB_ROWS), 0)
    ids = ids_ref[...]                                           # (BS, 1) int32
    hit = (col == ids) | (col == VOCAB + (row & (S - 1)))        # token col OR position col
    onehot = jnp.where(hit, 1.0, 0.0).astype(bf16)               # (BS, EMB_ROWS)
    x = jnp.dot(onehot, emb_w_ref[...], preferred_element_type=f32)   # (BS, H) f32

    x = _layer_norm(x,
                    bias_ref[_R_EMB:_R_EMB + 1, 0:H],
                    bias_ref[_R_EMB:_R_EMB + 1, H:2 * H])

    # ---- block-diagonal additive attention bias (layer-invariant, built once) ---------
    ri = lax.broadcasted_iota(jnp.int32, (BS, BS), 0) >> _LOG2_S
    ci = lax.broadcasted_iota(jnp.int32, (BS, BS), 1) >> _LOG2_S
    allowed = (ri == ci) & (mask_ref[...] > 0.5)                 # (BS, BS) same-sample & unmasked
    attn_bias = jnp.where(allowed, 0.0, -1e9)                    # f32

    # ---- transformer encoder layers (statically unrolled, weights VMEM resident) ------
    for l in range(LAYERS):
        r0 = 3 * l
        w_qkv = w_attn_ref[l, :, 0:3 * H]                        # (H, 3H) bf16 (Wq pre-scaled)
        w_o = w_attn_ref[l, :, 3 * H:4 * H]                      # (H, H)  bf16
        b_qkv = bias_ref[r0:r0 + 1, 0:3 * H]
        b_o = bias_ref[r0:r0 + 1, 3 * H:4 * H]

        qkv = _mxu(x, w_qkv) + b_qkv                             # (BS, 3H) f32
        q = qkv[:, 0:H]
        k = qkv[:, H:2 * H]
        v = qkv[:, 2 * H:3 * H]

        # 2-D block-diagonal single-head attention (synthetic stand-in for BERT MHA)
        scores = lax.dot_general(q.astype(bf16), k.astype(bf16),
                                 (((1,), (1,)), ((), ())),
                                 preferred_element_type=f32) + attn_bias
        scores = scores - jnp.max(scores, axis=-1, keepdims=True)
        p = jnp.exp(scores)
        attn = p * pl.reciprocal(jnp.sum(p, axis=-1, keepdims=True), approx=True)

        ctx = _mxu(attn, v.astype(bf16))                         # (BS, H)
        attn_out = _mxu(ctx, w_o) + b_o
        x1 = _layer_norm(x + attn_out,
                         bias_ref[r0 + 1:r0 + 2, 0:H],
                         bias_ref[r0 + 1:r0 + 2, H:2 * H])

        w1 = w_ffn_ref[l, 0:H, :]                                # (H, INTER) bf16
        w2 = w_ffn_ref[l, H:H + INTER, 0:H]                      # (INTER, H) bf16
        ffn = _gelu(_mxu(x1, w1) + bias_ref[r0 + 2:r0 + 3, 0:INTER])
        ffn = _mxu(ffn, w2) + bias_ref[r0 + 2:r0 + 3, INTER:INTER + H]
        x = _layer_norm(x1 + ffn,
                        bias_ref[r0 + 1:r0 + 2, 2 * H:3 * H],
                        bias_ref[r0 + 1:r0 + 2, 3 * H:4 * H])

    # ---- pooler: [CLS] rows picked with a tiny selection matmul (no reshape/relayout) --
    sel_hit = (lax.broadcasted_iota(jnp.int32, (B, BS), 1)
               == S * lax.broadcasted_iota(jnp.int32, (B, BS), 0))
    sel = jnp.where(sel_hit, 1.0, 0.0).astype(bf16)              # (B, BS)
    cls = jnp.dot(sel, x.astype(bf16), preferred_element_type=f32)    # (B, H)

    w_p = w_heads_ref[:, 0:H]                                    # pooler
    w_h1 = w_heads_ref[:, H:2 * H]                               # [Wc1 | Wr1]
    w_h2 = w_heads_ref[:, 2 * H:2 * H + NB + 1]                  # block-diag [Wc2 0; 0 Wr2]
    b_p = bias_ref[_R_EMB:_R_EMB + 1, 2 * H:3 * H]
    b_h1 = bias_ref[_R_HEAD:_R_HEAD + 1, 0:2 * H2]
    b_h2 = bias_ref[_R_HEAD:_R_HEAD + 1, 2 * H2:2 * H2 + NB + 1]

    pooled = jnp.tanh(_mxu(cls, w_p) + b_p)                      # (B, H)
    # TODO(synk): Dropout(0.2) is an eval-mode identity; training-mode dropout not implemented.
    h1 = jnp.maximum(_mxu(pooled, w_h1) + b_h1, 0.0)             # (B, 2*H2) = [clf | risk]
    h2 = _mxu(h1, w_h2) + b_h2                                   # (B, NB+1) = [logits | rlog]

    # exact softmax / sigmoid for the output heads (correctness feedback)
    logits = h2[:, 0:NB]
    logits = logits - jnp.max(logits, axis=-1, keepdims=True)
    e = jnp.exp(logits)
    probs = e / jnp.sum(e, axis=-1, keepdims=True)
    risk = 1.0 / (1.0 + jnp.exp(-h2[:, NB:NB + 1]))

    # lane-dense packed output via slice stores (no lane concatenate)
    out_ref[:, 0:NB] = probs
    out_ref[:, _RISK_OFF:_RISK_OFF + 1] = risk
    out_ref[:, _POOL_OFF:_POOL_OFF + H] = pooled


# ----------------------------- parameter init (deterministic) --------------------------
def init_params(key):
    ks = iter(jax.random.split(key, 64))

    def w(shape, scale=0.02):
        return (scale * jax.random.normal(next(ks), shape)).astype(jnp.float32)

    def zeros(shape):
        return jnp.zeros(shape, jnp.float32)

    def ones(shape):
        return jnp.ones(shape, jnp.float32)

    params = {
        'tok_emb': w((VOCAB, H)),
        'pos_emb': w((S, H)),
        'emb_gamma': ones((1, H)), 'emb_beta': zeros((1, H)),
        'layers': [],
        'wp': w((H, H)), 'bp': zeros((1, H)),
        'wc1': w((H, H2)), 'bc1': zeros((1, H2)),
        'wc2': w((H2, NB)), 'bc2': zeros((1, NB)),
        'wr1': w((H, H2)), 'br1': zeros((1, H2)),
        'wr2': w((H2, 1)), 'br2': zeros((1, 1)),
    }
    for _ in range(LAYERS):
        params['layers'].append({
            'wq': w((H, H)), 'bq': zeros((1, H)),
            'wk': w((H, H)), 'bk': zeros((1, H)),
            'wv': w((H, H)), 'bv': zeros((1, H)),
            'wo': w((H, H)), 'bo': zeros((1, H)),
            'g1': ones((1, H)), 'be1': zeros((1, H)),
            'w1': w((H, INTER)), 'bi1': zeros((1, INTER)),
            'w2': w((INTER, H)), 'bi2': zeros((1, H)),
            'g2': ones((1, H)), 'be2': zeros((1, H)),
        })
    return params


def pack_params(params):
    """Pack everything into 5 kernel slabs; fold 1/sqrt(H) into Wq/bq; weights -> bf16."""
    scale = 1.0 / float(H) ** 0.5
    bf16 = jnp.bfloat16

    def row128(*pieces):
        v = jnp.concatenate([jnp.reshape(p, (-1,)) for p in pieces])
        return jnp.pad(v, (0, OUT_W - v.shape[0]))

    w_attn, w_ffn, rows = [], [], []
    for lp in params['layers']:
        w_attn.append(jnp.concatenate(
            [lp['wq'] * scale, lp['wk'], lp['wv'], lp['wo']], axis=1))       # (H, 4H)
        w2_pad = jnp.pad(lp['w2'], ((0, 0), (0, INTER - H)))                 # (INTER, INTER)
        w_ffn.append(jnp.concatenate([lp['w1'], w2_pad], axis=0))            # (H+INTER, INTER)
        rows.append(row128(lp['bq'] * scale, lp['bk'], lp['bv'], lp['bo']))
        rows.append(row128(lp['g1'], lp['be1'], lp['g2'], lp['be2']))
        rows.append(row128(lp['bi1'], lp['bi2']))

    rows.append(row128(params['emb_gamma'], params['emb_beta'], params['bp']))
    rows.append(row128(params['bc1'], params['br1'], params['bc2'], params['br2']))

    w_h1 = jnp.concatenate([params['wc1'], params['wr1']], axis=1)           # (H, 2*H2)
    w_h2 = jnp.zeros((2 * H2, NB + 1), jnp.float32)
    w_h2 = w_h2.at[:H2, :NB].set(params['wc2']).at[H2:, NB:].set(params['wr2'])
    w_heads = jnp.concatenate([params['wp'], w_h1, w_h2], axis=1)            # (H, 2H+NB+1)

    emb_w = jnp.concatenate([params['tok_emb'], params['pos_emb']], axis=0)  # (VOCAB+S, H)

    return {
        'emb_w': emb_w.astype(bf16),
        'w_attn': jnp.stack(w_attn).astype(bf16),            # (LAYERS, H, 4H)
        'w_ffn': jnp.stack(w_ffn).astype(bf16),               # (LAYERS, H+INTER, INTER)
        'w_heads': w_heads.astype(bf16),                      # (H, 2H+NB+1)
        'bias_slab': jnp.stack(rows).astype(jnp.float32),     # (8, 128) -- one f32 tile
    }


# ----------------------------- pallas_call wrapper --------------------------------------
_fused_call = pl.pallas_call(
    fused_forward_kernel,
    out_shape=jax.ShapeDtypeStruct((B, OUT_W), jnp.float32),
    in_specs=[VMEM_SPEC] * 7,
    out_specs=VMEM_SPEC,
)

# NOTE: intentionally grid-less / single-TC.  At B=2, S=8 splitting across v7x's two
# TensorCores would duplicate every weight DMA for zero compute win.
# TODO(synk): at real BERT size (H=768, 12 layers) switch to grid=(LAYERS,) with per-layer
# BlockSpecs + Buffered pipelining; resident-weight design only works for this toy model.


def behavior_analyzer_forward(packed, input_ids, attention_mask):
    ids = input_ids.astype(jnp.int32).reshape(BS, 1)          # folded rows, sublane axis
    mask = attention_mask.astype(jnp.float32).reshape(1, BS)  # 1 = attend, 0 = pad

    out = _fused_call(ids, mask, packed['emb_w'], packed['w_attn'],
                      packed['w_ffn'], packed['w_heads'], packed['bias_slab'])

    return {'behavior_probabilities': out[:, :NB],
            'risk_score': out[:, _RISK_OFF:_RISK_OFF + 1],
            'embeddings': out[:, _POOL_OFF:_POOL_OFF + H]}


if __name__ == "__main__":
    key = jax.random.PRNGKey(0)
    k_param, k_ids = jax.random.split(key)

    packed = pack_params(init_params(k_param))
    input_ids = jax.random.randint(k_ids, (B, S), 0, VOCAB, dtype=jnp.int32)
    attention_mask = jnp.ones((B, S), jnp.int32).at[1, -2:].set(0)  # pad last 2 of sample 1

    out = jax.jit(behavior_analyzer_forward)(packed, input_ids, attention_mask)
    jax.block_until_ready(out)

    assert out['behavior_probabilities'].shape == (B, NB)
    assert out['risk_score'].shape == (B, 1)
    assert out['embeddings'].shape == (B, H)
    # exact softmax in the head: rows sum to 1; exact sigmoid in (0,1)
    assert jnp.allclose(jnp.sum(out['behavior_probabilities'], axis=-1), 1.0, atol=1e-4)
    assert bool(jnp.all((out['risk_score'] > 0.0) & (out['risk_score'] < 1.0)))

    print("KERNEL_OK")
</pallas_src>

<mosaic_0001>
module attributes {stable_mosaic.version = 11 : i64} {
  func.func @fused_forward_kernel(%arg0: memref<16x1xi32, #tpu.memory_space<vmem>>, %arg1: memref<1x16xf32, #tpu.memory_space<vmem>>, %arg2: memref<72x32xbf16, #tpu.memory_space<vmem>>, %arg3: memref<2x32x128xbf16, #tpu.memory_space<vmem>>, %arg4: memref<2x96x64xbf16, #tpu.memory_space<vmem>>, %arg5: memref<32x75xbf16, #tpu.memory_space<vmem>>, %arg6: memref<8x128xf32, #tpu.memory_space<vmem>>, %arg7: memref<2x128xf32, #tpu.memory_space<vmem>>) attributes {dimension_semantics = [], scalar_prefetch = 0 : i64, scratch_operands = 0 : i64, tpu.core_type = #tpu.core_type<tc>} {
    %cst = arith.constant 0.000000e+00 : f32
    %0 = vector.broadcast %cst : f32 to vector<2x128xf32>
    %c0 = arith.constant 0 : index
    %c0_0 = arith.constant 0 : index
    %1 = vector.load %arg7[%c0, %c0_0] : memref<2x128xf32, #tpu.memory_space<vmem>>, vector<2x128xf32>
    tpu.vector_store %arg7[%c0, %c0_0], %0 {strides = array<i32>} : memref<2x128xf32, #tpu.memory_space<vmem>>, vector<2x128xf32>,
    %2 = tpu.iota {dimensions = array<i32: 1>} : vector<16x72xi32>
    %3 = tpu.iota {dimensions = array<i32: 0>} : vector<16x72xi32>
    %c0_1 = arith.constant 0 : index
    %c0_2 = arith.constant 0 : index
    %4 = vector.load %arg0[%c0_1, %c0_2] : memref<16x1xi32, #tpu.memory_space<vmem>>, vector<16x1xi32>
    %5 = vector.broadcast %4 : vector<16x1xi32> to vector<16x72xi32>
    %6 = arith.cmpi eq, %2, %5 : vector<16x72xi32>
    %c7_i32 = arith.constant 7 : i32
    %7 = vector.broadcast %c7_i32 : i32 to vector<16x72xi32>
    %8 = arith.andi %3, %7 : vector<16x72xi32>
    %c64_i32 = arith.constant 64 : i32
    %9 = vector.broadcast %c64_i32 : i32 to vector<16x72xi32>
    %10 = arith.addi %9, %8 : vector<16x72xi32>
    %11 = arith.cmpi eq, %2, %10 : vector<16x72xi32>
    %12 = arith.ori %6, %11 : vector<16x72xi1>
    %cst_3 = arith.constant 1.000000e+00 : f32
    %cst_4 = arith.constant 0.000000e+00 : f32
    %13 = vector.broadcast %cst_3 : f32 to vector<16x72xf32>
    %14 = vector.broadcast %cst_4 : f32 to vector<16x72xf32>
    %15 = arith.select %12, %13, %14 : vector<16x72xi1>, vector<16x72xf32>
    %16 = arith.truncf %15 : vector<16x72xf32> to vector<16x72xbf16>
    %c0_5 = arith.constant 0 : index
    %c0_6 = arith.constant 0 : index
    %17 = vector.load %arg2[%c0_5, %c0_6] : memref<72x32xbf16, #tpu.memory_space<vmem>>, vector<72x32xbf16>
    %cst_7 = arith.constant dense<0.000000e+00> : vector<16x32xf32>
    %18 = tpu.matmul %16, %17, %cst_7 {dimension_numbers = #tpu.dot_dimension_numbers<[1], [0], [0], [1], [0, 0, 1, 1], [], []>} : vector<16x72xbf16>, vector<72x32xbf16>, vector<16x32xf32> -> vector<16x32xf32>
    %c6 = arith.constant 6 : index
    %c0_8 = arith.constant 0 : index
    %19 = vector.load %arg6[%c6, %c0_8] : memref<8x128xf32, #tpu.memory_space<vmem>>, vector<1x32xf32>
    %c6_9 = arith.constant 6 : index
    %c32 = arith.constant 32 : index
    %20 = vector.load %arg6[%c6_9, %c32] : memref<8x128xf32, #tpu.memory_space<vmem>>, vector<1x32xf32>
    %cst_10 = arith.constant dense<0.000000e+00> : vector<16xf32>
    %21 = vector.multi_reduction <add>, %18, %cst_10 [1] : vector<16x32xf32> to vector<16xf32>
    %22 = vector.shape_cast %21 : vector<16xf32> to vector<16x1xf32>
    %cst_11 = arith.constant 3.200000e+01 : f32
    %23 = vector.broadcast %cst_11 : f32 to vector<16x1xf32>
    %24 = arith.divf %22, %23 : vector<16x1xf32>
    %25 = vector.broadcast %24 : vector<16x1xf32> to vector<16x32xf32>
    %26 = arith.subf %18, %25 : vector<16x32xf32>
    %27 = arith.mulf %26, %26 : vector<16x32xf32>
    %cst_12 = arith.constant dense<0.000000e+00> : vector<16xf32>
    %28 = vector.multi_reduction <add>, %27, %cst_12 [1] : vector<16x32xf32> to vector<16xf32>
    %29 = vector.shape_cast %28 : vector<16xf32> to vector<16x1xf32>
    %cst_13 = arith.constant 3.200000e+01 : f32
    %30 = vector.broadcast %cst_13 : f32 to vector<16x1xf32>
    %31 = arith.divf %29, %30 : vector<16x1xf32>
    %32 = vector.broadcast %24 : vector<16x1xf32> to vector<16x32xf32>
    %33 = arith.subf %18, %32 : vector<16x32xf32>
    %cst_14 = arith.constant 9.99999996E-13 : f32
    %34 = vector.broadcast %cst_14 : f32 to vector<16x1xf32>
    %35 = arith.addf %31, %34 : vector<16x1xf32>
    %36 = math.rsqrt %35 : vector<16x1xf32>
    %37 = vector.broadcast %36 : vector<16x1xf32> to vector<16x32xf32>
    %38 = arith.mulf %33, %37 : vector<16x32xf32>
    %39 = vector.broadcast %19 : vector<1x32xf32> to vector<16x32xf32>
    %40 = arith.mulf %38, %39 : vector<16x32xf32>
    %41 = vector.broadcast %20 : vector<1x32xf32> to vector<16x32xf32>
    %42 = arith.addf %40, %41 : vector<16x32xf32>
    %43 = tpu.iota {dimensions = array<i32: 0>} : vector<16x16xi32>
    %c3_i32 = arith.constant 3 : i32
    %44 = vector.broadcast %c3_i32 : i32 to vector<16x16xi32>
    %45 = arith.shrsi %43, %44 : vector<16x16xi32>
    %46 = tpu.iota {dimensions = array<i32: 1>} : vector<16x16xi32>
    %c3_i32_15 = arith.constant 3 : i32
    %47 = vector.broadcast %c3_i32_15 : i32 to vector<16x16xi32>
    %48 = arith.shrsi %46, %47 : vector<16x16xi32>
    %49 = arith.cmpi eq, %45, %48 : vector<16x16xi32>
    %c0_16 = arith.constant 0 : index
    %c0_17 = arith.constant 0 : index
    %50 = vector.load %arg1[%c0_16, %c0_17] : memref<1x16xf32, #tpu.memory_space<vmem>>, vector<1x16xf32>
    %cst_18 = arith.constant 5.000000e-01 : f32
    %51 = vector.broadcast %cst_18 : f32 to vector<1x16xf32>
    %52 = arith.cmpf ogt, %50, %51 : vector<1x16xf32>
    %53 = vector.broadcast %52 : vector<1x16xi1> to vector<16x16xi1>
    %54 = arith.andi %49, %53 : vector<16x16xi1>
    %cst_19 = arith.constant 0.000000e+00 : f32
    %cst_20 = arith.constant -1.000000e+09 : f32
    %55 = vector.broadcast %cst_19 : f32 to vector<16x16xf32>
    %56 = vector.broadcast %cst_20 : f32 to vector<16x16xf32>
    %57 = arith.select %54, %55, %56 : vector<16x16xi1>, vector<16x16xf32>
    %c0_21 = arith.constant 0 : index
    %c0_22 = arith.constant 0 : index
    %c0_23 = arith.constant 0 : index
    %58 = vector.load %arg3[%c0_21, %c0_22, %c0_23] : memref<2x32x128xbf16, #tpu.memory_space<vmem>>, vector<1x32x96xbf16>
    %59 = vector.shape_cast %58 : vector<1x32x96xbf16> to vector<32x96xbf16>
    %c0_24 = arith.constant 0 : index
    %c0_25 = arith.constant 0 : index
    %c96 = arith.constant 96 : index
    %60 = vector.load %arg3[%c0_24, %c0_25, %c96] : memref<2x32x128xbf16, #tpu.memory_space<vmem>>, vector<1x32x32xbf16>
    %61 = vector.shape_cast %60 : vector<1x32x32xbf16> to vector<32x32xbf16>
    %c0_26 = arith.constant 0 : index
    %c0_27 = arith.constant 0 : index
    %62 = vector.load %arg6[%c0_26, %c0_27] : memref<8x128xf32, #tpu.memory_space<vmem>>, vector<1x96xf32>
    %c0_28 = arith.constant 0 : index
    %c96_29 = arith.constant 96 : index
    %63 = vector.load %arg6[%c0_28, %c96_29] : memref<8x128xf32, #tpu.memory_space<vmem>>, vector<1x32xf32>
    %64 = arith.truncf %42 : vector<16x32xf32> to vector<16x32xbf16>
    %cst_30 = arith.constant dense<0.000000e+00> : vector<16x96xf32>
    %65 = tpu.matmul %64, %59, %cst_30 {dimension_numbers = #tpu.dot_dimension_numbers<[1], [0], [0], [1], [0, 0, 1, 1], [], []>} : vector<16x32xbf16>, vector<32x96xbf16>, vector<16x96xf32> -> vector<16x96xf32>
    %66 = vector.broadcast %62 : vector<1x96xf32> to vector<16x96xf32>
    %67 = arith.addf %65, %66 : vector<16x96xf32>
    %68 = vector.extract_strided_slice %67 {offsets = [0, 0], sizes = [16, 32], strides = [1, 1]} : vector<16x96xf32> to vector<16x32xf32>
    %69 = vector.extract_strided_slice %67 {offsets = [0, 32], sizes = [16, 32], strides = [1, 1]} : vector<16x96xf32> to vector<16x32xf32>
    %70 = vector.extract_strided_slice %67 {offsets = [0, 64], sizes = [16, 32], strides = [1, 1]} : vector<16x96xf32> to vector<16x32xf32>
    %71 = arith.truncf %68 : vector<16x32xf32> to vector<16x32xbf16>
    %72 = arith.truncf %69 : vector<16x32xf32> to vector<16x32xbf16>
    %cst_31 = arith.constant dense<0.000000e+00> : vector<16x16xf32>
    %73 = tpu.matmul %71, %72, %cst_31 {dimension_numbers = #tpu.dot_dimension_numbers<[1], [1], [0], [0], [0, 0, 1, 0], [], []>} : vector<16x32xbf16>, vector<16x32xbf16>, vector<16x16xf32> -> vector<16x16xf32>
    %74 = arith.addf %73, %57 : vector<16x16xf32>
    %cst_32 = arith.constant dense<0xFF800000> : vector<16xf32>
    %75 = vector.multi_reduction <maximumf>, %74, %cst_32 [1] : vector<16x16xf32> to vector<16xf32>
    %76 = vector.shape_cast %75 : vector<16xf32> to vector<16x1xf32>
    %77 = vector.broadcast %76 : vector<16x1xf32> to vector<16x16xf32>
    %78 = arith.subf %74, %77 : vector<16x16xf32>
    %79 = math.exp %78 : vector<16x16xf32>
    %cst_33 = arith.constant dense<0.000000e+00> : vector<16xf32>
    %80 = vector.multi_reduction <add>, %79, %cst_33 [1] : vector<16x16xf32> to vector<16xf32>
    %81 = vector.shape_cast %80 : vector<16xf32> to vector<16x1xf32>
    %82 = tpu.reciprocal %81 {approx = true} : vector<16x1xf32> -> vector<16x1xf32>
    %83 = vector.broadcast %82 : vector<16x1xf32> to vector<16x16xf32>
    %84 = arith.mulf %79, %83 : vector<16x16xf32>
    %85 = arith.truncf %70 : vector<16x32xf32> to vector<16x32xbf16>
    %86 = arith.truncf %84 : vector<16x16xf32> to vector<16x16xbf16>
    %cst_34 = arith.constant dense<0.000000e+00> : vector<16x32xf32>
    %87 = tpu.matmul %86, %85, %cst_34 {dimension_numbers = #tpu.dot_dimension_numbers<[1], [0], [0], [1], [0, 0, 1, 1], [], []>} : vector<16x16xbf16>, vector<16x32xbf16>, vector<16x32xf32> -> vector<16x32xf32>
    %88 = arith.truncf %87 : vector<16x32xf32> to vector<16x32xbf16>
    %cst_35 = arith.constant dense<0.000000e+00> : vector<16x32xf32>
    %89 = tpu.matmul %88, %61, %cst_35 {dimension_numbers = #tpu.dot_dimension_numbers<[1], [0], [0], [1], [0, 0, 1, 1], [], []>} : vector<16x32xbf16>, vector<32x32xbf16>, vector<16x32xf32> -> vector<16x32xf32>
    %90 = vector.broadcast %63 : vector<1x32xf32> to vector<16x32xf32>
    %91 = arith.addf %89, %90 : vector<16x32xf32>
    %92 = arith.addf %42, %91 : vector<16x32xf32>
    %c1 = arith.constant 1 : index
    %c0_36 = arith.constant 0 : index
    %93 = vector.load %arg6[%c1, %c0_36] : memref<8x128xf32, #tpu.memory_space<vmem>>, vector<1x32xf32>
    %c1_37 = arith.constant 1 : index
    %c32_38 = arith.constant 32 : index
    %94 = vector.load %arg6[%c1_37, %c32_38] : memref<8x128xf32, #tpu.memory_space<vmem>>, vector<1x32xf32>
    %cst_39 = arith.constant dense<0.000000e+00> : vector<16xf32>
    %95 = vector.multi_reduction <add>, %92, %cst_39 [1] : vector<16x32xf32> to vector<16xf32>
    %96 = vector.shape_cast %95 : vector<16xf32> to vector<16x1xf32>
    %cst_40 = arith.constant 3.200000e+01 : f32
    %97 = vector.broadcast %cst_40 : f32 to vector<16x1xf32>
    %98 = arith.divf %96, %97 : vector<16x1xf32>
    %99 = vector.broadcast %98 : vector<16x1xf32> to vector<16x32xf32>
    %100 = arith.subf %92, %99 : vector<16x32xf32>
    %101 = arith.mulf %100, %100 : vector<16x32xf32>
    %cst_41 = arith.constant dense<0.000000e+00> : vector<16xf32>
    %102 = vector.multi_reduction <add>, %101, %cst_41 [1] : vector<16x32xf32> to vector<16xf32>
    %103 = vector.shape_cast %102 : vector<16xf32> to vector<16x1xf32>
    %cst_42 = arith.constant 3.200000e+01 : f32
    %104 = vector.broadcast %cst_42 : f32 to vector<16x1xf32>
    %105 = arith.divf %103, %104 : vector<16x1xf32>
    %106 = vector.broadcast %98 : vector<16x1xf32> to vector<16x32xf32>
    %107 = arith.subf %92, %106 : vector<16x32xf32>
    %cst_43 = arith.constant 9.99999996E-13 : f32
    %108 = vector.broadcast %cst_43 : f32 to vector<16x1xf32>
    %109 = arith.addf %105, %108 : vector<16x1xf32>
    %110 = math.rsqrt %109 : vector<16x1xf32>
    %111 = vector.broadcast %110 : vector<16x1xf32> to vector<16x32xf32>
    %112 = arith.mulf %107, %111 : vector<16x32xf32>
    %113 = vector.broadcast %93 : vector<1x32xf32> to vector<16x32xf32>
    %114 = arith.mulf %112, %113 : vector<16x32xf32>
    %115 = vector.broadcast %94 : vector<1x32xf32> to vector<16x32xf32>
    %116 = arith.addf %114, %115 : vector<16x32xf32>
    %c0_44 = arith.constant 0 : index
    %c0_45 = arith.constant 0 : index
    %c0_46 = arith.constant 0 : index
    %117 = vector.load %arg4[%c0_44, %c0_45, %c0_46] : memref<2x96x64xbf16, #tpu.memory_space<vmem>>, vector<1x32x64xbf16>
    %118 = vector.shape_cast %117 : vector<1x32x64xbf16> to vector<32x64xbf16>
    %c0_47 = arith.constant 0 : index
    %c32_48 = arith.constant 32 : index
    %c0_49 = arith.constant 0 : index
    %119 = vector.load %arg4[%c0_47, %c32_48, %c0_49] : memref<2x96x64xbf16, #tpu.memory_space<vmem>>, vector<1x64x32xbf16>
    %120 = vector.shape_cast %119 : vector<1x64x32xbf16> to vector<64x32xbf16>
    %121 = arith.truncf %116 : vector<16x32xf32> to vector<16x32xbf16>
    %cst_50 = arith.constant dense<0.000000e+00> : vector<16x64xf32>
    %122 = tpu.matmul %121, %118, %cst_50 {dimension_numbers = #tpu.dot_dimension_numbers<[1], [0], [0], [1], [0, 0, 1, 1], [], []>} : vector<16x32xbf16>, vector<32x64xbf16>, vector<16x64xf32> -> vector<16x64xf32>
    %c2 = arith.constant 2 : index
    %c0_51 = arith.constant 0 : index
    %123 = vector.load %arg6[%c2, %c0_51] : memref<8x128xf32, #tpu.memory_space<vmem>>, vector<1x64xf32>
    %124 = vector.broadcast %123 : vector<1x64xf32> to vector<16x64xf32>
    %125 = arith.addf %122, %124 : vector<16x64xf32>
    %cst_52 = arith.constant 5.000000e-01 : f32
    %126 = vector.broadcast %cst_52 : f32 to vector<16x64xf32>
    %127 = arith.mulf %126, %125 : vector<16x64xf32>
    %cst_53 = arith.constant 4.471500e-02 : f32
    %128 = vector.broadcast %cst_53 : f32 to vector<16x64xf32>
    %129 = arith.mulf %128, %125 : vector<16x64xf32>
    %130 = arith.mulf %129, %125 : vector<16x64xf32>
    %131 = arith.mulf %130, %125 : vector<16x64xf32>
    %132 = arith.addf %125, %131 : vector<16x64xf32>
    %cst_54 = arith.constant 0.797884583 : f32
    %133 = vector.broadcast %cst_54 : f32 to vector<16x64xf32>
    %134 = arith.mulf %133, %132 : vector<16x64xf32>
    %135 = math.tanh %134 : vector<16x64xf32>
    %cst_55 = arith.constant 1.000000e+00 : f32
    %136 = vector.broadcast %cst_55 : f32 to vector<16x64xf32>
    %137 = arith.addf %136, %135 : vector<16x64xf32>
    %138 = arith.mulf %127, %137 : vector<16x64xf32>
    %139 = arith.truncf %138 : vector<16x64xf32> to vector<16x64xbf16>
    %cst_56 = arith.constant dense<0.000000e+00> : vector<16x32xf32>
    %140 = tpu.matmul %139, %120, %cst_56 {dimension_numbers = #tpu.dot_dimension_numbers<[1], [0], [0], [1], [0, 0, 1, 1], [], []>} : vector<16x64xbf16>, vector<64x32xbf16>, vector<16x32xf32> -> vector<16x32xf32>
    %c2_57 = arith.constant 2 : index
    %c64 = arith.constant 64 : index
    %141 = vector.load %arg6[%c2_57, %c64] : memref<8x128xf32, #tpu.memory_space<vmem>>, vector<1x32xf32>
    %142 = vector.broadcast %141 : vector<1x32xf32> to vector<16x32xf32>
    %143 = arith.addf %140, %142 : vector<16x32xf32>
    %144 = arith.addf %116, %143 : vector<16x32xf32>
    %c1_58 = arith.constant 1 : index
    %c64_59 = arith.constant 64 : index
    %145 = vector.load %arg6[%c1_58, %c64_59] : memref<8x128xf32, #tpu.memory_space<vmem>>, vector<1x32xf32>
    %c1_60 = arith.constant 1 : index
    %c96_61 = arith.constant 96 : index
    %146 = vector.load %arg6[%c1_60, %c96_61] : memref<8x128xf32, #tpu.memory_space<vmem>>, vector<1x32xf32>
    %cst_62 = arith.constant dense<0.000000e+00> : vector<16xf32>
    %147 = vector.multi_reduction <add>, %144, %cst_62 [1] : vector<16x32xf32> to vector<16xf32>
    %148 = vector.shape_cast %147 : vector<16xf32> to vector<16x1xf32>
    %cst_63 = arith.constant 3.200000e+01 : f32
    %149 = vector.broadcast %cst_63 : f32 to vector<16x1xf32>
    %150 = arith.divf %148, %149 : vector<16x1xf32>
    %151 = vector.broadcast %150 : vector<16x1xf32> to vector<16x32xf32>
    %152 = arith.subf %144, %151 : vector<16x32xf32>
    %153 = arith.mulf %152, %152 : vector<16x32xf32>
    %cst_64 = arith.constant dense<0.000000e+00> : vector<16xf32>
    %154 = vector.multi_reduction <add>, %153, %cst_64 [1] : vector<16x32xf32> to vector<16xf32>
    %155 = vector.shape_cast %154 : vector<16xf32> to vector<16x1xf32>
    %cst_65 = arith.constant 3.200000e+01 : f32
    %156 = vector.broadcast %cst_65 : f32 to vector<16x1xf32>
    %157 = arith.divf %155, %156 : vector<16x1xf32>
    %158 = vector.broadcast %150 : vector<16x1xf32> to vector<16x32xf32>
    %159 = arith.subf %144, %158 : vector<16x32xf32>
    %cst_66 = arith.constant 9.99999996E-13 : f32
    %160 = vector.broadcast %cst_66 : f32 to vector<16x1xf32>
    %161 = arith.addf %157, %160 : vector<16x1xf32>
    %162 = math.rsqrt %161 : vector<16x1xf32>
    %163 = vector.broadcast %162 : vector<16x1xf32> to vector<16x32xf32>
    %164 = arith.mulf %159, %163 : vector<16x32xf32>
    %165 = vector.broadcast %145 : vector<1x32xf32> to vector<16x32xf32>
    %166 = arith.mulf %164, %165 : vector<16x32xf32>
    %167 = vector.broadcast %146 : vector<1x32xf32> to vector<16x32xf32>
    %168 = arith.addf %166, %167 : vector<16x32xf32>
    %c1_67 = arith.constant 1 : index
    %c0_68 = arith.constant 0 : index
    %c0_69 = arith.constant 0 : index
    %169 = vector.load %arg3[%c1_67, %c0_68, %c0_69] : memref<2x32x128xbf16, #tpu.memory_space<vmem>>, vector<1x32x96xbf16>
    %170 = vector.shape_cast %169 : vector<1x32x96xbf16> to vector<32x96xbf16>
    %c1_70 = arith.constant 1 : index
    %c0_71 = arith.constant 0 : index
    %c96_72 = arith.constant 96 : index
    %171 = vector.load %arg3[%c1_70, %c0_71, %c96_72] : memref<2x32x128xbf16, #tpu.memory_space<vmem>>, vector<1x32x32xbf16>
    %172 = vector.shape_cast %171 : vector<1x32x32xbf16> to vector<32x32xbf16>
    %c3 = arith.constant 3 : index
    %c0_73 = arith.constant 0 : index
    %173 = vector.load %arg6[%c3, %c0_73] : memref<8x128xf32, #tpu.memory_space<vmem>>, vector<1x96xf32>
    %c3_74 = arith.constant 3 : index
    %c96_75 = arith.constant 96 : index
    %174 = vector.load %arg6[%c3_74, %c96_75] : memref<8x128xf32, #tpu.memory_space<vmem>>, vector<1x32xf32>
    %175 = arith.truncf %168 : vector<16x32xf32> to vector<16x32xbf16>
    %cst_76 = arith.constant dense<0.000000e+00> : vector<16x96xf32>
    %176 = tpu.matmul %175, %170, %cst_76 {dimension_numbers = #tpu.dot_dimension_numbers<[1], [0], [0], [1], [0, 0, 1, 1], [], []>} : vector<16x32xbf16>, vector<32x96xbf16>, vector<16x96xf32> -> vector<16x96xf32>
    %177 = vector.broadcast %173 : vector<1x96xf32> to vector<16x96xf32>
    %178 = arith.addf %176, %177 : vector<16x96xf32>
    %179 = vector.extract_strided_slice %178 {offsets = [0, 0], sizes = [16, 32], strides = [1, 1]} : vector<16x96xf32> to vector<16x32xf32>
    %180 = vector.extract_strided_slice %178 {offsets = [0, 32], sizes = [16, 32], strides = [1, 1]} : vector<16x96xf32> to vector<16x32xf32>
    %181 = vector.extract_strided_slice %178 {offsets = [0, 64], sizes = [16, 32], strides = [1, 1]} : vector<16x96xf32> to vector<16x32xf32>
    %182 = arith.truncf %179 : vector<16x32xf32> to vector<16x32xbf16>
    %183 = arith.truncf %180 : vector<16x32xf32> to vector<16x32xbf16>
    %cst_77 = arith.constant dense<0.000000e+00> : vector<16x16xf32>
    %184 = tpu.matmul %182, %183, %cst_77 {dimension_numbers = #tpu.dot_dimension_numbers<[1], [1], [0], [0], [0, 0, 1, 0], [], []>} : vector<16x32xbf16>, vector<16x32xbf16>, vector<16x16xf32> -> vector<16x16xf32>
    %185 = arith.addf %184, %57 : vector<16x16xf32>
    %cst_78 = arith.constant dense<0xFF800000> : vector<16xf32>
    %186 = vector.multi_reduction <maximumf>, %185, %cst_78 [1] : vector<16x16xf32> to vector<16xf32>
    %187 = vector.shape_cast %186 : vector<16xf32> to vector<16x1xf32>
    %188 = vector.broadcast %187 : vector<16x1xf32> to vector<16x16xf32>
    %189 = arith.subf %185, %188 : vector<16x16xf32>
    %190 = math.exp %189 : vector<16x16xf32>
    %cst_79 = arith.constant dense<0.000000e+00> : vector<16xf32>
    %191 = vector.multi_reduction <add>, %190, %cst_79 [1] : vector<16x16xf32> to vector<16xf32>
    %192 = vector.shape_cast %191 : vector<16xf32> to vector<16x1xf32>
    %193 = tpu.reciprocal %192 {approx = true} : vector<16x1xf32> -> vector<16x1xf32>
    %194 = vector.broadcast %193 : vector<16x1xf32> to vector<16x16xf32>
    %195 = arith.mulf %190, %194 : vector<16x16xf32>
    %196 = arith.truncf %181 : vector<16x32xf32> to vector<16x32xbf16>
    %197 = arith.truncf %195 : vector<16x16xf32> to vector<16x16xbf16>
    %cst_80 = arith.constant dense<0.000000e+00> : vector<16x32xf32>
    %198 = tpu.matmul %197, %196, %cst_80 {dimension_numbers = #tpu.dot_dimension_numbers<[1], [0], [0], [1], [0, 0, 1, 1], [], []>} : vector<16x16xbf16>, vector<16x32xbf16>, vector<16x32xf32> -> vector<16x32xf32>
    %199 = arith.truncf %198 : vector<16x32xf32> to vector<16x32xbf16>
    %cst_81 = arith.constant dense<0.000000e+00> : vector<16x32xf32>
    %200 = tpu.matmul %199, %172, %cst_81 {dimension_numbers = #tpu.dot_dimension_numbers<[1], [0], [0], [1], [0, 0, 1, 1], [], []>} : vector<16x32xbf16>, vector<32x32xbf16>, vector<16x32xf32> -> vector<16x32xf32>
    %201 = vector.broadcast %174 : vector<1x32xf32> to vector<16x32xf32>
    %202 = arith.addf %200, %201 : vector<16x32xf32>
    %203 = arith.addf %168, %202 : vector<16x32xf32>
    %c4 = arith.constant 4 : index
    %c0_82 = arith.constant 0 : index
    %204 = vector.load %arg6[%c4, %c0_82] : memref<8x128xf32, #tpu.memory_space<vmem>>, vector<1x32xf32>
    %c4_83 = arith.constant 4 : index
    %c32_84 = arith.constant 32 : index
    %205 = vector.load %arg6[%c4_83, %c32_84] : memref<8x128xf32, #tpu.memory_space<vmem>>, vector<1x32xf32>
    %cst_85 = arith.constant dense<0.000000e+00> : vector<16xf32>
    %206 = vector.multi_reduction <add>, %203, %cst_85 [1] : vector<16x32xf32> to vector<16xf32>
    %207 = vector.shape_cast %206 : vector<16xf32> to vector<16x1xf32>
    %cst_86 = arith.constant 3.200000e+01 : f32
    %208 = vector.broadcast %cst_86 : f32 to vector<16x1xf32>
    %209 = arith.divf %207, %208 : vector<16x1xf32>
    %210 = vector.broadcast %209 : vector<16x1xf32> to vector<16x32xf32>
    %211 = arith.subf %203, %210 : vector<16x32xf32>
    %212 = arith.mulf %211, %211 : vector<16x32xf32>
    %cst_87 = arith.constant dense<0.000000e+00> : vector<16xf32>
    %213 = vector.multi_reduction <add>, %212, %cst_87 [1] : vector<16x32xf32> to vector<16xf32>
    %214 = vector.shape_cast %213 : vector<16xf32> to vector<16x1xf32>
    %cst_88 = arith.constant 3.200000e+01 : f32
    %215 = vector.broadcast %cst_88 : f32 to vector<16x1xf32>
    %216 = arith.divf %214, %215 : vector<16x1xf32>
    %217 = vector.broadcast %209 : vector<16x1xf32> to vector<16x32xf32>
    %218 = arith.subf %203, %217 : vector<16x32xf32>
    %cst_89 = arith.constant 9.99999996E-13 : f32
    %219 = vector.broadcast %cst_89 : f32 to vector<16x1xf32>
    %220 = arith.addf %216, %219 : vector<16x1xf32>
    %221 = math.rsqrt %220 : vector<16x1xf32>
    %222 = vector.broadcast %221 : vector<16x1xf32> to vector<16x32xf32>
    %223 = arith.mulf %218, %222 : vector<16x32xf32>
    %224 = vector.broadcast %204 : vector<1x32xf32> to vector<16x32xf32>
    %225 = arith.mulf %223, %224 : vector<16x32xf32>
    %226 = vector.broadcast %205 : vector<1x32xf32> to vector<16x32xf32>
    %227 = arith.addf %225, %226 : vector<16x32xf32>
    %c1_90 = arith.constant 1 : index
    %c0_91 = arith.constant 0 : index
    %c0_92 = arith.constant 0 : index
    %228 = vector.load %arg4[%c1_90, %c0_91, %c0_92] : memref<2x96x64xbf16, #tpu.memory_space<vmem>>, vector<1x32x64xbf16>
    %229 = vector.shape_cast %228 : vector<1x32x64xbf16> to vector<32x64xbf16>
    %c1_93 = arith.constant 1 : index
    %c32_94 = arith.constant 32 : index
    %c0_95 = arith.constant 0 : index
    %230 = vector.load %arg4[%c1_93, %c32_94, %c0_95] : memref<2x96x64xbf16, #tpu.memory_space<vmem>>, vector<1x64x32xbf16>
    %231 = vector.shape_cast %230 : vector<1x64x32xbf16> to vector<64x32xbf16>
    %232 = arith.truncf %227 : vector<16x32xf32> to vector<16x32xbf16>
    %cst_96 = arith.constant dense<0.000000e+00> : vector<16x64xf32>
    %233 = tpu.matmul %232, %229, %cst_96 {dimension_numbers = #tpu.dot_dimension_numbers<[1], [0], [0], [1], [0, 0, 1, 1], [], []>} : vector<16x32xbf16>, vector<32x64xbf16>, vector<16x64xf32> -> vector<16x64xf32>
    %c5 = arith.constant 5 : index
    %c0_97 = arith.constant 0 : index
    %234 = vector.load %arg6[%c5, %c0_97] : memref<8x128xf32, #tpu.memory_space<vmem>>, vector<1x64xf32>
    %235 = vector.broadcast %234 : vector<1x64xf32> to vector<16x64xf32>
    %236 = arith.addf %233, %235 : vector<16x64xf32>
    %cst_98 = arith.constant 5.000000e-01 : f32
    %237 = vector.broadcast %cst_98 : f32 to vector<16x64xf32>
    %238 = arith.mulf %237, %236 : vector<16x64xf32>
    %cst_99 = arith.constant 4.471500e-02 : f32
    %239 = vector.broadcast %cst_99 : f32 to vector<16x64xf32>
    %240 = arith.mulf %239, %236 : vector<16x64xf32>
    %241 = arith.mulf %240, %236 : vector<16x64xf32>
    %242 = arith.mulf %241, %236 : vector<16x64xf32>
    %243 = arith.addf %236, %242 : vector<16x64xf32>
    %cst_100 = arith.constant 0.797884583 : f32
    %244 = vector.broadcast %cst_100 : f32 to vector<16x64xf32>
    %245 = arith.mulf %244, %243 : vector<16x64xf32>
    %246 = math.tanh %245 : vector<16x64xf32>
    %cst_101 = arith.constant 1.000000e+00 : f32
    %247 = vector.broadcast %cst_101 : f32 to vector<16x64xf32>
    %248 = arith.addf %247, %246 : vector<16x64xf32>
    %249 = arith.mulf %238, %248 : vector<16x64xf32>
    %250 = arith.truncf %249 : vector<16x64xf32> to vector<16x64xbf16>
    %cst_102 = arith.constant dense<0.000000e+00> : vector<16x32xf32>
    %251 = tpu.matmul %250, %231, %cst_102 {dimension_numbers = #tpu.dot_dimension_numbers<[1], [0], [0], [1], [0, 0, 1, 1], [], []>} : vector<16x64xbf16>, vector<64x32xbf16>, vector<16x32xf32> -> vector<16x32xf32>
    %c5_103 = arith.constant 5 : index
    %c64_104 = arith.constant 64 : index
    %252 = vector.load %arg6[%c5_103, %c64_104] : memref<8x128xf32, #tpu.memory_space<vmem>>, vector<1x32xf32>
    %253 = vector.broadcast %252 : vector<1x32xf32> to vector<16x32xf32>
    %254 = arith.addf %251, %253 : vector<16x32xf32>
    %255 = arith.addf %227, %254 : vector<16x32xf32>
    %c4_105 = arith.constant 4 : index
    %c64_106 = arith.constant 64 : index
    %256 = vector.load %arg6[%c4_105, %c64_106] : memref<8x128xf32, #tpu.memory_space<vmem>>, vector<1x32xf32>
    %c4_107 = arith.constant 4 : index
    %c96_108 = arith.constant 96 : index
    %257 = vector.load %arg6[%c4_107, %c96_108] : memref<8x128xf32, #tpu.memory_space<vmem>>, vector<1x32xf32>
    %cst_109 = arith.constant dense<0.000000e+00> : vector<16xf32>
    %258 = vector.multi_reduction <add>, %255, %cst_109 [1] : vector<16x32xf32> to vector<16xf32>
    %259 = vector.shape_cast %258 : vector<16xf32> to vector<16x1xf32>
    %cst_110 = arith.constant 3.200000e+01 : f32
    %260 = vector.broadcast %cst_110 : f32 to vector<16x1xf32>
    %261 = arith.divf %259, %260 : vector<16x1xf32>
    %262 = vector.broadcast %261 : vector<16x1xf32> to vector<16x32xf32>
    %263 = arith.subf %255, %262 : vector<16x32xf32>
    %264 = arith.mulf %263, %263 : vector<16x32xf32>
    %cst_111 = arith.constant dense<0.000000e+00> : vector<16xf32>
    %265 = vector.multi_reduction <add>, %264, %cst_111 [1] : vector<16x32xf32> to vector<16xf32>
    %266 = vector.shape_cast %265 : vector<16xf32> to vector<16x1xf32>
    %cst_112 = arith.constant 3.200000e+01 : f32
    %267 = vector.broadcast %cst_112 : f32 to vector<16x1xf32>
    %268 = arith.divf %266, %267 : vector<16x1xf32>
    %269 = vector.broadcast %261 : vector<16x1xf32> to vector<16x32xf32>
    %270 = arith.subf %255, %269 : vector<16x32xf32>
    %cst_113 = arith.constant 9.99999996E-13 : f32
    %271 = vector.broadcast %cst_113 : f32 to vector<16x1xf32>
    %272 = arith.addf %268, %271 : vector<16x1xf32>
    %273 = math.rsqrt %272 : vector<16x1xf32>
    %274 = vector.broadcast %273 : vector<16x1xf32> to vector<16x32xf32>
    %275 = arith.mulf %270, %274 : vector<16x32xf32>
    %276 = vector.broadcast %256 : vector<1x32xf32> to vector<16x32xf32>
    %277 = arith.mulf %275, %276 : vector<16x32xf32>
    %278 = vector.broadcast %257 : vector<1x32xf32> to vector<16x32xf32>
    %279 = arith.addf %277, %278 : vector<16x32xf32>
    %280 = tpu.iota {dimensions = array<i32: 1>} : vector<2x16xi32>
    %281 = tpu.iota {dimensions = array<i32: 0>} : vector<2x16xi32>
    %c8_i32 = arith.constant 8 : i32
    %282 = vector.broadcast %c8_i32 : i32 to vector<2x16xi32>
    %283 = arith.muli %282, %281 : vector<2x16xi32>
    %284 = arith.cmpi eq, %280, %283 : vector<2x16xi32>
    %cst_114 = arith.constant 1.000000e+00 : f32
    %cst_115 = arith.constant 0.000000e+00 : f32
    %285 = vector.broadcast %cst_114 : f32 to vector<2x16xf32>
    %286 = vector.broadcast %cst_115 : f32 to vector<2x16xf32>
    %287 = arith.select %284, %285, %286 : vector<2x16xi1>, vector<2x16xf32>
    %288 = arith.truncf %287 : vector<2x16xf32> to vector<2x16xbf16>
    %289 = arith.truncf %279 : vector<16x32xf32> to vector<16x32xbf16>
    %cst_116 = arith.constant dense<0.000000e+00> : vector<2x32xf32>
    %290 = tpu.matmul %288, %289, %cst_116 {dimension_numbers = #tpu.dot_dimension_numbers<[1], [0], [0], [1], [0, 0, 1, 1], [], []>} : vector<2x16xbf16>, vector<16x32xbf16>, vector<2x32xf32> -> vector<2x32xf32>
    %c0_117 = arith.constant 0 : index
    %c0_118 = arith.constant 0 : index
    %291 = vector.load %arg5[%c0_117, %c0_118] : memref<32x75xbf16, #tpu.memory_space<vmem>>, vector<32x32xbf16>
    %c0_119 = arith.constant 0 : index
    %c32_120 = arith.constant 32 : index
    %292 = vector.load %arg5[%c0_119, %c32_120] : memref<32x75xbf16, #tpu.memory_space<vmem>>, vector<32x32xbf16>
    %c0_121 = arith.constant 0 : index
    %c64_122 = arith.constant 64 : index
    %293 = vector.load %arg5[%c0_121, %c64_122] : memref<32x75xbf16, #tpu.memory_space<vmem>>, vector<32x11xbf16>
    %c6_123 = arith.constant 6 : index
    %c64_124 = arith.constant 64 : index
    %294 = vector.load %arg6[%c6_123, %c64_124] : memref<8x128xf32, #tpu.memory_space<vmem>>, vector<1x32xf32>
    %c7 = arith.constant 7 : index
    %c0_125 = arith.constant 0 : index
    %295 = vector.load %arg6[%c7, %c0_125] : memref<8x128xf32, #tpu.memory_space<vmem>>, vector<1x32xf32>
    %c7_126 = arith.constant 7 : index
    %c32_127 = arith.constant 32 : index
    %296 = vector.load %arg6[%c7_126, %c32_127] : memref<8x128xf32, #tpu.memory_space<vmem>>, vector<1x11xf32>
    %297 = arith.truncf %290 : vector<2x32xf32> to vector<2x32xbf16>
    %cst_128 = arith.constant dense<0.000000e+00> : vector<2x32xf32>
    %298 = tpu.matmul %297, %291, %cst_128 {dimension_numbers = #tpu.dot_dimension_numbers<[1], [0], [0], [1], [0, 0, 1, 1], [], []>} : vector<2x32xbf16>, vector<32x32xbf16>, vector<2x32xf32> -> vector<2x32xf32>
    %299 = vector.broadcast %294 : vector<1x32xf32> to vector<2x32xf32>
    %300 = arith.addf %298, %299 : vector<2x32xf32>
    %301 = math.tanh %300 : vector<2x32xf32>
    %302 = arith.truncf %301 : vector<2x32xf32> to vector<2x32xbf16>
    %cst_129 = arith.constant dense<0.000000e+00> : vector<2x32xf32>
    %303 = tpu.matmul %302, %292, %cst_129 {dimension_numbers = #tpu.dot_dimension_numbers<[1], [0], [0], [1], [0, 0, 1, 1], [], []>} : vector<2x32xbf16>, vector<32x32xbf16>, vector<2x32xf32> -> vector<2x32xf32>
    %304 = vector.broadcast %295 : vector<1x32xf32> to vector<2x32xf32>
    %305 = arith.addf %303, %304 : vector<2x32xf32>
    %cst_130 = arith.constant 0.000000e+00 : f32
    %306 = vector.broadcast %cst_130 : f32 to vector<2x32xf32>
    %307 = arith.maximumf %305, %306 : vector<2x32xf32>
    %308 = arith.truncf %307 : vector<2x32xf32> to vector<2x32xbf16>
    %cst_131 = arith.constant dense<0.000000e+00> : vector<2x11xf32>
    %309 = tpu.matmul %308, %293, %cst_131 {dimension_numbers = #tpu.dot_dimension_numbers<[1], [0], [0], [1], [0, 0, 1, 1], [], []>} : vector<2x32xbf16>, vector<32x11xbf16>, vector<2x11xf32> -> vector<2x11xf32>
    %310 = vector.broadcast %296 : vector<1x11xf32> to vector<2x11xf32>
    %311 = arith.addf %309, %310 : vector<2x11xf32>
    %312 = vector.extract_strided_slice %311 {offsets = [0, 0], sizes = [2, 10], strides = [1, 1]} : vector<2x11xf32> to vector<2x10xf32>
    %cst_132 = arith.constant dense<0xFF800000> : vector<2xf32>
    %313 = vector.multi_reduction <maximumf>, %312, %cst_132 [1] : vector<2x10xf32> to vector<2xf32>
    %314 = vector.shape_cast %313 : vector<2xf32> to vector<2x1xf32>
    %315 = vector.broadcast %314 : vector<2x1xf32> to vector<2x10xf32>
    %316 = arith.subf %312, %315 : vector<2x10xf32>
    %317 = math.exp %316 : vector<2x10xf32>
    %cst_133 = arith.constant dense<0.000000e+00> : vector<2xf32>
    %318 = vector.multi_reduction <add>, %317, %cst_133 [1] : vector<2x10xf32> to vector<2xf32>
    %319 = vector.shape_cast %318 : vector<2xf32> to vector<2x1xf32>
    %320 = vector.broadcast %319 : vector<2x1xf32> to vector<2x10xf32>
    %321 = arith.divf %317, %320 : vector<2x10xf32>
    %322 = vector.extract_strided_slice %311 {offsets = [0, 10], sizes = [2, 1], strides = [1, 1]} : vector<2x11xf32> to vector<2x1xf32>
    %cst_134 = arith.constant 0.000000e+00 : f32
    %323 = vector.broadcast %cst_134 : f32 to vector<2x1xf32>
    %324 = arith.subf %323, %322 : vector<2x1xf32>
    %325 = math.exp %324 : vector<2x1xf32>
    %cst_135 = arith.constant 1.000000e+00 : f32
    %326 = vector.broadcast %cst_135 : f32 to vector<2x1xf32>
    %327 = arith.addf %326, %325 : vector<2x1xf32>
    %cst_136 = arith.constant 1.000000e+00 : f32
    %328 = vector.broadcast %cst_136 : f32 to vector<2x1xf32>
    %329 = arith.divf %328, %327 : vector<2x1xf32>
    %c0_137 = arith.constant 0 : index
    %c0_138 = arith.constant 0 : index
    %330 = vector.load %arg7[%c0_137, %c0_138] : memref<2x128xf32, #tpu.memory_space<vmem>>, vector<2x10xf32>
    tpu.vector_store %arg7[%c0_137, %c0_138], %321 {strides = array<i32>} : memref<2x128xf32, #tpu.memory_space<vmem>>, vector<2x10xf32>,
    %c0_139 = arith.constant 0 : index
    %c10 = arith.constant 10 : index
    %331 = vector.load %arg7[%c0_139, %c10] : memref<2x128xf32, #tpu.memory_space<vmem>>, vector<2x1xf32>
    tpu.vector_store %arg7[%c0_139, %c10], %329 {strides = array<i32>} : memref<2x128xf32, #tpu.memory_space<vmem>>, vector<2x1xf32>,
    %c0_140 = arith.constant 0 : index
    %c11 = arith.constant 11 : index
    %332 = vector.load %arg7[%c0_140, %c11] : memref<2x128xf32, #tpu.memory_space<vmem>>, vector<2x32xf32>
    tpu.vector_store %arg7[%c0_140, %c11], %301 {strides = array<i32>} : memref<2x128xf32, #tpu.memory_space<vmem>>, vector<2x32xf32>,
    return
  }
}

</mosaic_0001>

<llo_original>
// kernel: behavior_analyzer_forward.1
$region0: #{behavior_analyzer_forward.1}
  #allocation0 [shape = 'u32[]', space=smem, size = 0x4, offset = 0x4, fixed_abs, tag = 'smem constant byte address 0x4 - core index']
  #allocation1 [shape = 'u32[144,128]{1,0:T(1,128)}', space=vmem, size = 0x12000, scoped, tag = 'internal scratch']
  %s0 = inlined_call_operand.vmem [shape: s32[16,1], index: 0, kind: input, shape index: {}]
  %s1 = inlined_call_operand.vmem [shape: f32[1,16], index: 1, kind: input, shape index: {}]
  %s2 = inlined_call_operand.vmem [shape: bf16[72,32], index: 2, kind: input, shape index: {}]
  %s3 = inlined_call_operand.vmem [shape: bf16[2,32,128], index: 3, kind: input, shape index: {}]
  %s4 = inlined_call_operand.vmem [shape: bf16[2,96,64], index: 4, kind: input, shape index: {}]
  %s5 = inlined_call_operand.vmem [shape: bf16[32,75], index: 5, kind: input, shape index: {}]
  %s6 = inlined_call_operand.vmem [shape: f32[8,128], index: 6, kind: input, shape index: {}]
  %s7 = inlined_call_operand.vmem [shape: f32[2,128], index: 7, kind: output, shape index: {}]
  %s8 = sld [smem:[#allocation0]]
  $region38: #{behavior_analyzer_forward.1} parent=0
    _
  %s10 = ssub.s32 1, %s8
  %s11 = scalar_select 0, %s10, %s8
  // Predicated region
  $region2: #{behavior_analyzer_forward.1} parent=0 // pred_check
    _
  $region3: #{behavior_analyzer_forward.1} parent=0 // pred_check_branch
    %13 = sbr.rel (0) target = $region5
  $region4: #{behavior_analyzer_forward.1} parent=0 // pred_region
    _
  $region5: #{behavior_analyzer_forward.1} parent=0 // pred_fallthru
    _
  // Predicated region
  $region6: #{behavior_analyzer_forward.1} parent=0 // pred_check
    _
  $region7: #{behavior_analyzer_forward.1} parent=0 // pred_check_branch
    %15 = sbr.rel (0) target = $region9
  $region8: #{behavior_analyzer_forward.1} parent=0 // pred_region
    _
  $region9: #{behavior_analyzer_forward.1} parent=0 // pred_fallthru
    _
  // Predicated region
  $region10: #{behavior_analyzer_forward.1} parent=0 // pred_check
    _
  $region11: #{behavior_analyzer_forward.1} parent=0 // pred_check_branch
    %17 = sbr.rel (0) target = $region13
  $region12: #{behavior_analyzer_forward.1} parent=0 // pred_region
    _
  $region13: #{behavior_analyzer_forward.1} parent=0 // pred_fallthru
    _
  // Predicated region
  $region14: #{behavior_analyzer_forward.1} parent=0 // pred_check
    _
  $region15: #{behavior_analyzer_forward.1} parent=0 // pred_check_branch
    %19 = sbr.rel (0) target = $region17
  $region16: #{behavior_analyzer_forward.1} parent=0 // pred_region
    _
  $region17: #{behavior_analyzer_forward.1} parent=0 // pred_fallthru
    _
  // Predicated region
  $region18: #{behavior_analyzer_forward.1} parent=0 // pred_check
    _
  $region19: #{behavior_analyzer_forward.1} parent=0 // pred_check_branch
    %21 = sbr.rel (0) target = $region21
  $region20: #{behavior_analyzer_forward.1} parent=0 // pred_region
    _
  $region21: #{behavior_analyzer_forward.1} parent=0 // pred_fallthru
    _
  // Predicated region
  $region22: #{behavior_analyzer_forward.1} parent=0 // pred_check
    _
  $region23: #{behavior_analyzer_forward.1} parent=0 // pred_check_branch
    %23 = sbr.rel (0) target = $region25
  $region24: #{behavior_analyzer_forward.1} parent=0 // pred_region
    _
  $region25: #{behavior_analyzer_forward.1} parent=0 // pred_fallthru
    _
  // Predicated region
  $region26: #{behavior_analyzer_forward.1} parent=0 // pred_check
    _
  $region27: #{behavior_analyzer_forward.1} parent=0 // pred_check_branch
    %25 = sbr.rel (0) target = $region29
  $region28: #{behavior_analyzer_forward.1} parent=0 // pred_region
    _
  $region29: #{behavior_analyzer_forward.1} parent=0 // pred_fallthru
    _
  %27 = vst [vmem:[%s7] sm:$0x3] 0.0
  %v28 = vlaneseq
  %v29 = vand.u32 %v28, 127
  %v30 = vlaneseq
  %v31 = vshrl.u32 %v30, 7
  %v32 = vadd.s32 %v31, 8
  %v33 = vld [vmem:[%s0] sm:$0xff]
  %v34 = vld [vmem:[%s0 + $0x8] sm:$0xff]
  %35 = vset.pattern.permute.xlu0 0
  %36 = vperm.xlu0 %35, %v33
  %v37 = vpop.permute.xlu0 %36
  %38 = vset.pattern.permute.xlu0 0
  %39 = vperm.xlu0 %38, %v34
  %v40 = vpop.permute.xlu0 %39
  %vm41 = vcmp.eq.s32.totalorder %v29, %v37
  %vm42 = vcmp.eq.s32.totalorder %v29, %v40
  %v43 = vand.u32 %v31, 7
  %v44 = vand.u32 %v32, 7
  %v45 = vadd.s32 %v43, 64
  %v46 = vadd.s32 %v44, 64
  %vm47 = vcmp.eq.s32.totalorder %v29, %v45
  %vm48 = vcmp.eq.s32.totalorder %v29, %v46
  %vm49 = vmor %vm41, %vm47
  %vm50 = vmor %vm42, %vm48
  %v51 = vsel %vm49, 1.0, 0.0
  %v52 = vsel %vm50, 1.0, 0.0
  %v53 = vpack.c.bf16 %v52, %v51
  %v54 = vld [vmem:[%s2] sm:$0xf]
  %v55 = vld [vmem:[%s2 + $0x4] sm:$0xf]
  %v56 = vld [vmem:[%s2 + $0x8] sm:$0xf]
  %v57 = vld [vmem:[%s2 + $0xc] sm:$0xf]
  %v58 = vld [vmem:[%s2 + $0x10] sm:$0xf]
  %v59 = vld [vmem:[%s2 + $0x14] sm:$0xf]
  %v60 = vld [vmem:[%s2 + $0x18] sm:$0xf]
  %v61 = vld [vmem:[%s2 + $0x1c] sm:$0xf]
  %v62 = vld [vmem:[%s2 + $0x20] sm:$0xf]
  %v72 = vunpack.c.l.b16 %v54
  %v73 = vunpack.c.l.b16 %v55
  %v74 = vunpack.c.l.b16 %v56
  %v75 = vunpack.c.l.b16 %v57
  %v76 = vunpack.c.l.b16 %v58
  %v77 = vunpack.c.l.b16 %v59
  %v78 = vunpack.c.l.b16 %v60
  %v79 = vunpack.c.l.b16 %v61
  %v80 = vunpack.c.l.b16 %v62
  %v81 = vpack.c.b16 %v73, %v72
  %v82 = vpack.c.b16 %v75, %v74
  %v83 = vpack.c.b16 %v77, %v76
  %v84 = vpack.c.b16 %v79, %v78
  %v85 = vpack.c.b16 %v80, %v80
  %vm90 = vcmask 588800
  %v92 = vsel %vm90, %v53, 0
  %vm94 = vcmask 1043456
  %v96 = vsel %vm94, %v85, 0
  %98 = vmatprep.subr.bf16.mxu0 0
  %99 = vmatpush1.bf16.msra.mxu0 0
  %100 = vmatprep.subr.bf16.mxu0 0
  %101 = vmatpush1.bf16.msra.mxu0 0
  %102 = vmatprep.subr.bf16.mxu0 0
  %103 = vmatpush1.bf16.msra.mxu0 0
  %104 = vmatprep.subr.bf16.mxu0 0
  %105 = vmatpush1.bf16.msra.mxu0 %v96
  %106 = vmatprep.subr.bf16.mxu0 0
  %107 = vmatpush1.bf16.msra.mxu0 %v84
  %108 = vmatprep.subr.bf16.mxu0 0
  %109 = vmatpush1.bf16.msra.mxu0 %v83
  %110 = vmatprep.subr.bf16.mxu0 0
  %111 = vmatpush1.bf16.msra.mxu0 %v82
  %112 = vmatprep.subr.bf16.mxu0 0
  %113 = vmatpush1.bf16.msra.mxu0 %v81
  %114 = vmatprep.subr.bf16.mxu0 0
  %115 = vmatpush2.bf16.msra.mxu0 0
  %116 = vmatprep.subr.bf16.mxu0 0
  %117 = vmatpush2.bf16.msra.mxu0 0
  %118 = vmatprep.subr.bf16.mxu0 0
  %119 = vmatpush2.bf16.msra.mxu0 0
  %120 = vmatprep.subr.bf16.mxu0 0
  %121 = vmatpush2.bf16.msra.mxu0 0
  %122 = vmatprep.subr.bf16.mxu0 0
  %123 = vmatpush2.bf16.msra.mxu0 0
  %124 = vmatprep.subr.bf16.mxu0 0
  %125 = vmatpush2.bf16.msra.mxu0 0
  %126 = vmatprep.subr.bf16.mxu0 0
  %127 = vmatpush2.bf16.msra.mxu0 0
  %128 = vmatprep.subr.bf16.mxu0 0
  %129 = vmatpush2.bf16.msra.mxu0 0
  %130 = vmatprep.mubr.bf16.mxu0 0
  %131 = vmatmul.mubr.bf16.gmra.mxu0 %v92
  %v132 = vpop.f32.mrf.mxu0
  %v133 = vadd.f32 0.0, %v132
  %v134 = vpop.f32.mrf.mxu0
  %v135 = vpop.f32.mrf.mxu0
  %v136 = vadd.f32 0.0, %v135
  %v137 = vpop.f32.mrf.mxu0
  %138 = vdwg.mxu0
  %v139 = vld [vmem:[%s6 + $0x6] sm:$0x1]
  %vm140 = vcmask 261120
  %v141 = vsel %vm140, %v133, 0.0
  %142 = vadd.xlane.f32.xlu0 %v141
  %v143 = vpop.xlane.xlu0 %142
  %v144 = vsel %vm140, %v136, 0.0
  %145 = vadd.xlane.f32.xlu0 %v144
  %v146 = vpop.xlane.xlu0 %145
  %v147 = vrcp.pop 32.0
  %v148 = vmul.f32 %v143, %v147
  %v149 = vmul.f32 %v146, %v147
  %v150 = vsub.f32 %v133, %v148
  %v151 = vsub.f32 %v136, %v149
  %v152 = vmul.f32 %v150, %v150
  %v153 = vmul.f32 %v151, %v151
  %v154 = vsel %vm140, %v152, 0.0
  %155 = vadd.xlane.f32.xlu0 %v154
  %v156 = vpop.xlane.xlu0 %155
  %v157 = vsel %vm140, %v153, 0.0
  %158 = vadd.xlane.f32.xlu0 %v157
  %v159 = vpop.xlane.xlu0 %158
  %v160 = vmul.f32 %v156, %v147
  %v161 = vmul.f32 %v159, %v147
  %v162 = vadd.f32 %v160, 1e-12
  %v163 = vadd.f32 %v161, 1e-12
  %v164 = vrsqrt.pop %v162
  %v165 = vrsqrt.pop %v163
  %v166 = vmul.f32 %v150, %v164
  %v167 = vmul.f32 %v151, %v165
  %v168 = vlaneseq
  %v169 = vshrl.u32 %v168, 7
  %v170 = vsub.s32 0, %v169
  %v171 = vrot.slane %v139, %v170
  %v172 = vmul.f32 %v166, %v171
  %v173 = vmul.f32 %v167, %v171
  %175 = vrot.lane.b32.xlu0 %v171, 96
  %v176 = vpop.permute.xlu0 %175
  %v178 = vadd.f32 %v172, %v176
  %v179 = vadd.f32 %v173, %v176
  %v180 = vshra.s32 %v31, 3
  %v181 = vshra.s32 %v32, 3
  %v182 = vshra.s32 %v29, 3
  %vm183 = vcmp.eq.s32.totalorder %v180, %v182
  %vm184 = vcmp.eq.s32.totalorder %v181, %v182
  %v185 = vld [vmem:[%s1] sm:$0x1]
  %vm186 = vcmp.gt.f32.partialorder %v185, 0.5
  %v187 = vsel %vm186, 1, 0
  %v188 = vlaneseq
  %v189 = vshrl.u32 %v188, 7
  %v190 = vsub.s32 0, %v189
  %v191 = vrot.slane %v187, %v190
  %vm192 = vcmp.eq.s32.totalorder %v191, 1
  %vm193 = vmand %vm183, %vm192
  %vm194 = vmand %vm184, %vm192
  %v195 = vsel %vm193, 0.0, -1e+09
  %v196 = vsel %vm194, 0.0, -1e+09
  %v197 = vld [vmem:[%s3] sm:$0xf]
  %v198 = vld [vmem:[%s3 + $0x4] sm:$0xf]
  %v199 = vld [vmem:[%s3 + $0x8] sm:$0xf]
  %v200 = vld [vmem:[%s3 + $0xc] sm:$0xf]
  %v201 = vld [vmem:[%s6] sm:$0x1]
  %v202 = vpack.c.bf16 %v179, %v178
  %v203 = vlaneseq
  %v204 = vshrl.u32 %v203, 7
  %v205 = vsub.s32 0, %v204
  %v206 = vrot.slane %v201, %v205
  %v211 = vunpack.c.l.b16 %v197
  %v212 = vunpack.c.l.b16 %v198
  %v213 = vunpack.c.l.b16 %v199
  %v214 = vunpack.c.l.b16 %v200
  %v215 = vpack.c.b16 %v212, %v211
  %v216 = vpack.c.b16 %v214, %v213
  %v220 = vsel %vm140, %v202, 0
  %222 = vmatprep.subr.bf16.mxu0 0
  %223 = vmatpush1.bf16.msra.mxu0 0
  %224 = vmatprep.subr.bf16.mxu0 0
  %225 = vmatpush1.bf16.msra.mxu0 0
  %226 = vmatprep.subr.bf16.mxu0 0
  %227 = vmatpush1.bf16.msra.mxu0 0
  %228 = vmatprep.subr.bf16.mxu0 0
  %229 = vmatpush1.bf16.msra.mxu0 0
  %230 = vmatprep.subr.bf16.mxu0 0
  %231 = vmatpush1.bf16.msra.mxu0 0
  %232 = vmatprep.subr.bf16.mxu0 0
  %233 = vmatpush1.bf16.msra.mxu0 0
  %234 = vmatprep.subr.bf16.mxu0 0
  %235 = vmatpush1.bf16.msra.mxu0 %v216
  %236 = vmatprep.subr.bf16.mxu0 0
  %237 = vmatpush1.bf16.msra.mxu0 %v215
  %238 = vmatprep.subr.bf16.mxu0 0
  %239 = vmatpush2.bf16.msra.mxu0 0
  %240 = vmatprep.subr.bf16.mxu0 0
  %241 = vmatpush2.bf16.msra.mxu0 0
  %242 = vmatprep.subr.bf16.mxu0 0
  %243 = vmatpush2.bf16.msra.mxu0 0
  %244 = vmatprep.subr.bf16.mxu0 0
  %245 = vmatpush2.bf16.msra.mxu0 0
  %246 = vmatprep.subr.bf16.mxu0 0
  %247 = vmatpush2.bf16.msra.mxu0 0
  %248 = vmatprep.subr.bf16.mxu0 0
  %249 = vmatpush2.bf16.msra.mxu0 0
  %250 = vmatprep.subr.bf16.mxu0 0
  %251 = vmatpush2.bf16.msra.mxu0 0
  %252 = vmatprep.subr.bf16.mxu0 0
  %253 = vmatpush2.bf16.msra.mxu0 0
  %254 = vmatprep.mubr.bf16.mxu0 0
  %255 = vmatmul.mubr.bf16.gmra.mxu0 %v220
  %v256 = vpop.f32.mrf.mxu0
  %v257 = vadd.f32 %v206, %v256
  %v258 = vpop.f32.mrf.mxu0
  %v259 = vpop.f32.mrf.mxu0
  %v260 = vadd.f32 %v206, %v259
  %v261 = vpop.f32.mrf.mxu0
  %262 = vdwg.mxu0
  %v263 = vpack.c.bf16 %v260, %v257
  %265 = vrot.lane.b32.xlu0 %v263, 96
  %v266 = vpop.permute.xlu0 %265
  %v268 = vsel %vm140, %v263, 0
  %v271 = vsel %vm140, %v266, 0
  %273 = vmatprep.subr.bf16.mxu0 0
  %274 = vmatpush1.bf16.xpose.msra.mxu0 0
  %275 = vmatprep.subr.bf16.mxu0 0
  %276 = vmatpush1.bf16.xpose.msra.mxu0 0
  %277 = vmatprep.subr.bf16.mxu0 0
  %278 = vmatpush1.bf16.xpose.msra.mxu0 0
  %279 = vmatprep.subr.bf16.mxu0 0
  %280 = vmatpush1.bf16.xpose.msra.mxu0 0
  %281 = vmatprep.subr.bf16.mxu0 0
  %282 = vmatpush1.bf16.xpose.msra.mxu0 0
  %283 = vmatprep.subr.bf16.mxu0 0
  %284 = vmatpush1.bf16.xpose.msra.mxu0 0
  %285 = vmatprep.subr.bf16.mxu0 0
  %286 = vmatpush1.bf16.xpose.msra.mxu0 0
  %287 = vmatprep.subr.bf16.mxu0 0
  %288 = vmatpush1.bf16.xpose.msra.mxu0 %v271
  %289 = vmatprep.subr.bf16.mxu0 0
  %290 = vmatpush2.bf16.xpose.msra.mxu0 0
  %291 = vmatprep.subr.bf16.mxu0 0
  %292 = vmatpush2.bf16.xpose.msra.mxu0 0
  %293 = vmatprep.subr.bf16.mxu0 0
  %294 = vmatpush2.bf16.xpose.msra.mxu0 0
  %295 = vmatprep.subr.bf16.mxu0 0
  %296 = vmatpush2.bf16.xpose.msra.mxu0 0
  %297 = vmatprep.subr.bf16.mxu0 0
  %298 = vmatpush2.bf16.xpose.msra.mxu0 0
  %299 = vmatprep.subr.bf16.mxu0 0
  %300 = vmatpush2.bf16.xpose.msra.mxu0 0
  %301 = vmatprep.subr.bf16.mxu0 0
  %302 = vmatpush2.bf16.xpose.msra.mxu0 0
  %303 = vmatprep.subr.bf16.mxu0 0
  %304 = vmatpush2.bf16.xpose.msra.mxu0 0
  %305 = vmatprep.mubr.bf16.mxu0 0
  %306 = vmatmul.mubr.bf16.gmra.mxu0 %v268
  %v307 = vpop.f32.mrf.mxu0
  %v308 = vadd.f32 %v195, %v307
  %v309 = vpop.f32.mrf.mxu0
  %v310 = vpop.f32.mrf.mxu0
  %v311 = vadd.f32 %v196, %v310
  %v312 = vpop.f32.mrf.mxu0
  %313 = vdwg.mxu0
  %vm314 = vcmask 130048
  %v315 = vsel %vm314, %v308, -inf
  %316 = vmax.xlane.f32.xlu0 %v315
  %v317 = vpop.xlane.xlu0 %316
  %v318 = vsel %vm314, %v311, -inf
  %319 = vmax.xlane.f32.xlu0 %v318
  %v320 = vpop.xlane.xlu0 %319
  %v321 = vsub.f32 %v308, %v317
  %v322 = vsub.f32 %v311, %v320
  %v323 = vmul.f32 %v321, 1.442695
  %v324 = vpow.pop %v323
  %v325 = vmul.f32 %v322, 1.442695
  %v326 = vpow.pop %v325
  %v327 = vsel %vm314, %v324, 0.0
  %328 = vadd.xlane.f32.xlu0 %v327
  %v329 = vpop.xlane.xlu0 %328
  %v330 = vsel %vm314, %v326, 0.0
  %331 = vadd.xlane.f32.xlu0 %v330
  %v332 = vpop.xlane.xlu0 %331
  %v333 = vrcp.pop %v329
  %v334 = vrcp.pop %v332
  %v335 = vmul.f32 %v324, %v333
  %v336 = vmul.f32 %v326, %v334
  %v337 = vpack.c.bf16 %v336, %v335
  %338 = vrot.lane.b32.xlu0 %v263, 64
  %v339 = vpop.permute.xlu0 %338
  %v342 = vsel %vm314, %v337, 0
  %344 = vmatprep.subr.bf16.mxu0 0
  %345 = vmatpush1.bf16.msra.mxu0 0
  %346 = vmatprep.subr.bf16.mxu0 0
  %347 = vmatpush1.bf16.msra.mxu0 0
  %348 = vmatprep.subr.bf16.mxu0 0
  %349 = vmatpush1.bf16.msra.mxu0 0
  %350 = vmatprep.subr.bf16.mxu0 0
  %351 = vmatpush1.bf16.msra.mxu0 0
  %352 = vmatprep.subr.bf16.mxu0 0
  %353 = vmatpush1.bf16.msra.mxu0 0
  %354 = vmatprep.subr.bf16.mxu0 0
  %355 = vmatpush1.bf16.msra.mxu0 0
  %356 = vmatprep.subr.bf16.mxu0 0
  %357 = vmatpush1.bf16.msra.mxu0 0
  %358 = vmatprep.subr.bf16.mxu0 0
  %359 = vmatpush1.bf16.msra.mxu0 %v339
  %360 = vmatprep.subr.bf16.mxu0 0
  %361 = vmatpush2.bf16.msra.mxu0 0
  %362 = vmatprep.subr.bf16.mxu0 0
  %363 = vmatpush2.bf16.msra.mxu0 0
  %364 = vmatprep.subr.bf16.mxu0 0
  %365 = vmatpush2.bf16.msra.mxu0 0
  %366 = vmatprep.subr.bf16.mxu0 0
  %367 = vmatpush2.bf16.msra.mxu0 0
  %368 = vmatprep.subr.bf16.mxu0 0
  %369 = vmatpush2.bf16.msra.mxu0 0
  %370 = vmatprep.subr.bf16.mxu0 0
  %371 = vmatpush2.bf16.msra.mxu0 0
  %372 = vmatprep.subr.bf16.mxu0 0
  %373 = vmatpush2.bf16.msra.mxu0 0
  %374 = vmatprep.subr.bf16.mxu0 0
  %375 = vmatpush2.bf16.msra.mxu0 0
  %376 = vmatprep.mubr.bf16.mxu0 0
  %377 = vmatmul.mubr.bf16.gmra.mxu0 %v342
  %v378 = vpop.f32.mrf.mxu0
  %v379 = vadd.f32 0.0, %v378
  %v380 = vpop.f32.mrf.mxu0
  %v381 = vpop.f32.mrf.mxu0
  %v382 = vadd.f32 0.0, %v381
  %v383 = vpop.f32.mrf.mxu0
  %384 = vdwg.mxu0
  %v385 = vpack.c.bf16 %v382, %v379
  %386 = vrot.lane.b32.xlu0 %v215, 32
  %v387 = vpop.permute.xlu0 %386
  %388 = vrot.lane.b32.xlu0 %v216, 32
  %v389 = vpop.permute.xlu0 %388
  %393 = vrot.lane.b32.xlu0 %v206, 32
  %v394 = vpop.permute.xlu0 %393
  %v397 = vsel %vm140, %v385, 0
  %399 = vmatprep.subr.bf16.mxu0 0
  %400 = vmatpush1.bf16.msra.mxu0 0
  %401 = vmatprep.subr.bf16.mxu0 0
  %402 = vmatpush1.bf16.msra.mxu0 0
  %403 = vmatprep.subr.bf16.mxu0 0
  %404 = vmatpush1.bf16.msra.mxu0 0
  %405 = vmatprep.subr.bf16.mxu0 0
  %406 = vmatpush1.bf16.msra.mxu0 0
  %407 = vmatprep.subr.bf16.mxu0 0
  %408 = vmatpush1.bf16.msra.mxu0 0
  %409 = vmatprep.subr.bf16.mxu0 0
  %410 = vmatpush1.bf16.msra.mxu0 0
  %411 = vmatprep.subr.bf16.mxu0 0
  %412 = vmatpush1.bf16.msra.mxu0 %v389
  %413 = vmatprep.subr.bf16.mxu0 0
  %414 = vmatpush1.bf16.msra.mxu0 %v387
  %415 = vmatprep.subr.bf16.mxu0 0
  %416 = vmatpush2.bf16.msra.mxu0 0
  %417 = vmatprep.subr.bf16.mxu0 0
  %418 = vmatpush2.bf16.msra.mxu0 0
  %419 = vmatprep.subr.bf16.mxu0 0
  %420 = vmatpush2.bf16.msra.mxu0 0
  %421 = vmatprep.subr.bf16.mxu0 0
  %422 = vmatpush2.bf16.msra.mxu0 0
  %423 = vmatprep.subr.bf16.mxu0 0
  %424 = vmatpush2.bf16.msra.mxu0 0
  %425 = vmatprep.subr.bf16.mxu0 0
  %426 = vmatpush2.bf16.msra.mxu0 0
  %427 = vmatprep.subr.bf16.mxu0 0
  %428 = vmatpush2.bf16.msra.mxu0 0
  %429 = vmatprep.subr.bf16.mxu0 0
  %430 = vmatpush2.bf16.msra.mxu0 0
  %431 = vmatprep.mubr.bf16.mxu0 0
  %432 = vmatmul.mubr.bf16.gmra.mxu0 %v397
  %v433 = vpop.f32.mrf.mxu0
  %v434 = vadd.f32 %v394, %v433
  %v435 = vpop.f32.mrf.mxu0
  %v436 = vpop.f32.mrf.mxu0
  %v437 = vadd.f32 %v394, %v436
  %v438 = vpop.f32.mrf.mxu0
  %439 = vdwg.mxu0
  %v440 = vadd.f32 %v178, %v434
  %v441 = vadd.f32 %v179, %v437
  %v442 = vld [vmem:[%s6 + $0x1] sm:$0x1]
  %v443 = vsel %vm140, %v440, 0.0
  %444 = vadd.xlane.f32.xlu0 %v443
  %v445 = vpop.xlane.xlu0 %444
  %v446 = vsel %vm140, %v441, 0.0
  %447 = vadd.xlane.f32.xlu0 %v446
  %v448 = vpop.xlane.xlu0 %447
  %v449 = vmul.f32 %v445, %v147
  %v450 = vmul.f32 %v448, %v147
  %v451 = vsub.f32 %v440, %v449
  %v452 = vsub.f32 %v441, %v450
  %v453 = vmul.f32 %v451, %v451
  %v454 = vmul.f32 %v452, %v452
  %v455 = vsel %vm140, %v453, 0.0
  %456 = vadd.xlane.f32.xlu0 %v455
  %v457 = vpop.xlane.xlu0 %456
  %v458 = vsel %vm140, %v454, 0.0
  %459 = vadd.xlane.f32.xlu0 %v458
  %v460 = vpop.xlane.xlu0 %459
  %v461 = vmul.f32 %v457, %v147
  %v462 = vmul.f32 %v460, %v147
  %v463 = vadd.f32 %v461, 1e-12
  %v464 = vadd.f32 %v462, 1e-12
  %v465 = vrsqrt.pop %v463
  %v466 = vrsqrt.pop %v464
  %v467 = vmul.f32 %v451, %v465
  %v468 = vmul.f32 %v452, %v466
  %v469 = vlaneseq
  %v470 = vshrl.u32 %v469, 7
  %v471 = vsub.s32 0, %v470
  %v472 = vrot.slane %v442, %v471
  %v473 = vmul.f32 %v467, %v472
  %v474 = vmul.f32 %v468, %v472
  %476 = vrot.lane.b32.xlu0 %v472, 96
  %v477 = vpop.permute.xlu0 %476
  %v479 = vadd.f32 %v473, %v477
  %v480 = vadd.f32 %v474, %v477
  %v481 = vld [vmem:[%s4] sm:$0xf]
  %v482 = vld [vmem:[%s4 + $0x4] sm:$0xf]
  %v483 = vld [vmem:[%s4 + $0x8] sm:$0xf]
  %v484 = vld [vmem:[%s4 + $0xc] sm:$0xf]
  %v485 = vld [vmem:[%s4 + $0x10] sm:$0xf]
  %v486 = vld [vmem:[%s4 + $0x14] sm:$0xf]
  %v487 = vld [vmem:[%s4 + $0x18] sm:$0xf]
  %v488 = vld [vmem:[%s4 + $0x1c] sm:$0xf]
  %v489 = vld [vmem:[%s4 + $0x20] sm:$0xf]
  %v490 = vld [vmem:[%s4 + $0x24] sm:$0xf]
  %v491 = vld [vmem:[%s4 + $0x28] sm:$0xf]
  %v492 = vld [vmem:[%s4 + $0x2c] sm:$0xf]
  %v493 = vpack.c.bf16 %v480, %v479
  %v494 = vld [vmem:[%s6 + $0x2] sm:$0x1]
  %v495 = vlaneseq
  %v496 = vshrl.u32 %v495, 7
  %v497 = vsub.s32 0, %v496
  %v498 = vrot.slane %v494, %v497
  %v503 = vunpack.c.l.b16 %v481
  %v504 = vunpack.c.l.b16 %v482
  %v505 = vunpack.c.l.b16 %v483
  %v506 = vunpack.c.l.b16 %v484
  %v507 = vpack.c.b16 %v504, %v503
  %v508 = vpack.c.b16 %v506, %v505
  %v512 = vsel %vm140, %v493, 0
  %514 = vmatprep.subr.bf16.mxu0 0
  %515 = vmatpush1.bf16.msra.mxu0 0
  %516 = vmatprep.subr.bf16.mxu0 0
  %517 = vmatpush1.bf16.msra.mxu0 0
  %518 = vmatprep.subr.bf16.mxu0 0
  %519 = vmatpush1.bf16.msra.mxu0 0
  %520 = vmatprep.subr.bf16.mxu0 0
  %521 = vmatpush1.bf16.msra.mxu0 0
  %522 = vmatprep.subr.bf16.mxu0 0
  %523 = vmatpush1.bf16.msra.mxu0 0
  %524 = vmatprep.subr.bf16.mxu0 0
  %525 = vmatpush1.bf16.msra.mxu0 0
  %526 = vmatprep.subr.bf16.mxu0 0
  %527 = vmatpush1.bf16.msra.mxu0 %v508
  %528 = vmatprep.subr.bf16.mxu0 0
  %529 = vmatpush1.bf16.msra.mxu0 %v507
  %530 = vmatprep.subr.bf16.mxu0 0
  %531 = vmatpush2.bf16.msra.mxu0 0
  %532 = vmatprep.subr.bf16.mxu0 0
  %533 = vmatpush2.bf16.msra.mxu0 0
  %534 = vmatprep.subr.bf16.mxu0 0
  %535 = vmatpush2.bf16.msra.mxu0 0
  %536 = vmatprep.subr.bf16.mxu0 0
  %537 = vmatpush2.bf16.msra.mxu0 0
  %538 = vmatprep.subr.bf16.mxu0 0
  %539 = vmatpush2.bf16.msra.mxu0 0
  %540 = vmatprep.subr.bf16.mxu0 0
  %541 = vmatpush2.bf16.msra.mxu0 0
  %542 = vmatprep.subr.bf16.mxu0 0
  %543 = vmatpush2.bf16.msra.mxu0 0
  %544 = vmatprep.subr.bf16.mxu0 0
  %545 = vmatpush2.bf16.msra.mxu0 0
  %546 = vmatprep.mubr.bf16.mxu0 0
  %547 = vmatmul.mubr.bf16.gmra.mxu0 %v512
  %v548 = vpop.f32.mrf.mxu0
  %v549 = vadd.f32 %v498, %v548
  %v550 = vpop.f32.mrf.mxu0
  %v551 = vpop.f32.mrf.mxu0
  %v552 = vadd.f32 %v498, %v551
  %v553 = vpop.f32.mrf.mxu0
  %554 = vdwg.mxu0
  %v555 = vmul.f32 %v549, 0.5
  %v556 = vmul.f32 %v552, 0.5
  %v557 = vmul.f32 %v549, 0.044715
  %v558 = vmul.f32 %v552, 0.044715
  %v559 = vmul.f32 %v557, %v549
  %v560 = vmul.f32 %v558, %v552
  %v561 = vmul.f32 %v559, %v549
  %v562 = vmul.f32 %v560, %v552
  %v563 = vadd.f32 %v549, %v561
  %v564 = vadd.f32 %v552, %v562
  %v565 = vmul.f32 %v563, 0.7978846
  %v566 = vmul.f32 %v564, 0.7978846
  %v567 = vtanh.pop %v565
  %v568 = vtanh.pop %v566
  %v569 = vadd.f32 %v567, 1.0
  %v570 = vadd.f32 %v568, 1.0
  %v571 = vmul.f32 %v555, %v569
  %v572 = vmul.f32 %v556, %v570
  %v573 = vpack.c.bf16 %v572, %v571
  %v582 = vunpack.c.l.b16 %v485
  %v583 = vunpack.c.l.b16 %v486
  %v584 = vunpack.c.l.b16 %v487
  %v585 = vunpack.c.l.b16 %v488
  %v586 = vunpack.c.l.b16 %v489
  %v587 = vunpack.c.l.b16 %v490
  %v588 = vunpack.c.l.b16 %v491
  %v589 = vunpack.c.l.b16 %v492
  %v590 = vpack.c.b16 %v583, %v582
  %v591 = vpack.c.b16 %v585, %v584
  %v592 = vpack.c.b16 %v587, %v586
  %v593 = vpack.c.b16 %v589, %v588
  %599 = vrot.lane.b32.xlu0 %v498, 64
  %v600 = vpop.permute.xlu0 %599
  %vm602 = vcmask 523264
  %v604 = vsel %vm602, %v573, 0
  %606 = vmatprep.subr.bf16.mxu0 0
  %607 = vmatpush1.bf16.msra.mxu0 0
  %608 = vmatprep.subr.bf16.mxu0 0
  %609 = vmatpush1.bf16.msra.mxu0 0
  %610 = vmatprep.subr.bf16.mxu0 0
  %611 = vmatpush1.bf16.msra.mxu0 0
  %612 = vmatprep.subr.bf16.mxu0 0
  %613 = vmatpush1.bf16.msra.mxu0 0
  %614 = vmatprep.subr.bf16.mxu0 0
  %615 = vmatpush1.bf16.msra.mxu0 %v593
  %616 = vmatprep.subr.bf16.mxu0 0
  %617 = vmatpush1.bf16.msra.mxu0 %v592
  %618 = vmatprep.subr.bf16.mxu0 0
  %619 = vmatpush1.bf16.msra.mxu0 %v591
  %620 = vmatprep.subr.bf16.mxu0 0
  %621 = vmatpush1.bf16.msra.mxu0 %v590
  %622 = vmatprep.subr.bf16.mxu0 0
  %623 = vmatpush2.bf16.msra.mxu0 0
  %624 = vmatprep.subr.bf16.mxu0 0
  %625 = vmatpush2.bf16.msra.mxu0 0
  %626 = vmatprep.subr.bf16.mxu0 0
  %627 = vmatpush2.bf16.msra.mxu0 0
  %628 = vmatprep.subr.bf16.mxu0 0
  %629 = vmatpush2.bf16.msra.mxu0 0
  %630 = vmatprep.subr.bf16.mxu0 0
  %631 = vmatpush2.bf16.msra.mxu0 0
  %632 = vmatprep.subr.bf16.mxu0 0
  %633 = vmatpush2.bf16.msra.mxu0 0
  %634 = vmatprep.subr.bf16.mxu0 0
  %635 = vmatpush2.bf16.msra.mxu0 0
  %636 = vmatprep.subr.bf16.mxu0 0
  %637 = vmatpush2.bf16.msra.mxu0 0
  %638 = vmatprep.mubr.bf16.mxu0 0
  %639 = vmatmul.mubr.bf16.gmra.mxu0 %v604
  %v640 = vpop.f32.mrf.mxu0
  %v641 = vadd.f32 %v600, %v640
  %v642 = vpop.f32.mrf.mxu0
  %v643 = vpop.f32.mrf.mxu0
  %v644 = vadd.f32 %v600, %v643
  %v645 = vpop.f32.mrf.mxu0
  %646 = vdwg.mxu0
  %v647 = vadd.f32 %v479, %v641
  %v648 = vadd.f32 %v480, %v644
  %v649 = vsel %vm140, %v647, 0.0
  %650 = vadd.xlane.f32.xlu0 %v649
  %v651 = vpop.xlane.xlu0 %650
  %v652 = vsel %vm140, %v648, 0.0
  %653 = vadd.xlane.f32.xlu0 %v652
  %v654 = vpop.xlane.xlu0 %653
  %v655 = vmul.f32 %v651, %v147
  %v656 = vmul.f32 %v654, %v147
  %v657 = vsub.f32 %v647, %v655
  %v658 = vsub.f32 %v648, %v656
  %v659 = vmul.f32 %v657, %v657
  %v660 = vmul.f32 %v658, %v658
  %v661 = vsel %vm140, %v659, 0.0
  %662 = vadd.xlane.f32.xlu0 %v661
  %v663 = vpop.xlane.xlu0 %662
  %v664 = vsel %vm140, %v660, 0.0
  %665 = vadd.xlane.f32.xlu0 %v664
  %v666 = vpop.xlane.xlu0 %665
  %v667 = vmul.f32 %v663, %v147
  %v668 = vmul.f32 %v666, %v147
  %v669 = vadd.f32 %v667, 1e-12
  %v670 = vadd.f32 %v668, 1e-12
  %v671 = vrsqrt.pop %v669
  %v672 = vrsqrt.pop %v670
  %v673 = vmul.f32 %v657, %v671
  %v674 = vmul.f32 %v658, %v672
  %675 = vrot.lane.b32.xlu0 %v472, 64
  %v676 = vpop.permute.xlu0 %675
  %v678 = vmul.f32 %v673, %v676
  %v679 = vmul.f32 %v674, %v676
  %680 = vrot.lane.b32.xlu0 %v472, 32
  %v681 = vpop.permute.xlu0 %680
  %v683 = vadd.f32 %v678, %v681
  %v684 = vadd.f32 %v679, %v681
  %s685 = scalar_lea.vmem %s3, 16
  %v686 = vld [vmem:[%s685] sm:$0xf]
  %v687 = vld [vmem:[%s685 + $0x4] sm:$0xf]
  %v688 = vld [vmem:[%s685 + $0x8] sm:$0xf]
  %v689 = vld [vmem:[%s685 + $0xc] sm:$0xf]
  %v690 = vld [vmem:[%s6 + $0x3] sm:$0x1]
  %v691 = vpack.c.bf16 %v684, %v683
  %v692 = vlaneseq
  %v693 = vshrl.u32 %v692, 7
  %v694 = vsub.s32 0, %v693
  %v695 = vrot.slane %v690, %v694
  %v700 = vunpack.c.l.b16 %v686
  %v701 = vunpack.c.l.b16 %v687
  %v702 = vunpack.c.l.b16 %v688
  %v703 = vunpack.c.l.b16 %v689
  %v704 = vpack.c.b16 %v701, %v700
  %v705 = vpack.c.b16 %v703, %v702
  %v709 = vsel %vm140, %v691, 0
  %711 = vmatprep.subr.bf16.mxu0 0
  %712 = vmatpush1.bf16.msra.mxu0 0
  %713 = vmatprep.subr.bf16.mxu0 0
  %714 = vmatpush1.bf16.msra.mxu0 0
  %715 = vmatprep.subr.bf16.mxu0 0
  %716 = vmatpush1.bf16.msra.mxu0 0
  %717 = vmatprep.subr.bf16.mxu0 0
  %718 = vmatpush1.bf16.msra.mxu0 0
  %719 = vmatprep.subr.bf16.mxu0 0
  %720 = vmatpush1.bf16.msra.mxu0 0
  %721 = vmatprep.subr.bf16.mxu0 0
  %722 = vmatpush1.bf16.msra.mxu0 0
  %723 = vmatprep.subr.bf16.mxu0 0
  %724 = vmatpush1.bf16.msra.mxu0 %v705
  %725 = vmatprep.subr.bf16.mxu0 0
  %726 = vmatpush1.bf16.msra.mxu0 %v704
  %727 = vmatprep.subr.bf16.mxu0 0
  %728 = vmatpush2.bf16.msra.mxu0 0
  %729 = vmatprep.subr.bf16.mxu0 0
  %730 = vmatpush2.bf16.msra.mxu0 0
  %731 = vmatprep.subr.bf16.mxu0 0
  %732 = vmatpush2.bf16.msra.mxu0 0
  %733 = vmatprep.subr.bf16.mxu0 0
  %734 = vmatpush2.bf16.msra.mxu0 0
  %735 = vmatprep.subr.bf16.mxu0 0
  %736 = vmatpush2.bf16.msra.mxu0 0
  %737 = vmatprep.subr.bf16.mxu0 0
  %738 = vmatpush2.bf16.msra.mxu0 0
  %739 = vmatprep.subr.bf16.mxu0 0
  %740 = vmatpush2.bf16.msra.mxu0 0
  %741 = vmatprep.subr.bf16.mxu0 0
  %742 = vmatpush2.bf16.msra.mxu0 0
  %743 = vmatprep.mubr.bf16.mxu0 0
  %744 = vmatmul.mubr.bf16.gmra.mxu0 %v709
  %v745 = vpop.f32.mrf.mxu0
  %v746 = vadd.f32 %v695, %v745
  %v747 = vpop.f32.mrf.mxu0
  %v748 = vpop.f32.mrf.mxu0
  %v749 = vadd.f32 %v695, %v748
  %v750 = vpop.f32.mrf.mxu0
  %751 = vdwg.mxu0
  %v752 = vpack.c.bf16 %v749, %v746
  %754 = vrot.lane.b32.xlu0 %v752, 96
  %v755 = vpop.permute.xlu0 %754
  %v757 = vsel %vm140, %v752, 0
  %v760 = vsel %vm140, %v755, 0
  %762 = vmatprep.subr.bf16.mxu0 0
  %763 = vmatpush1.bf16.xpose.msra.mxu0 0
  %764 = vmatprep.subr.bf16.mxu0 0
  %765 = vmatpush1.bf16.xpose.msra.mxu0 0
  %766 = vmatprep.subr.bf16.mxu0 0
  %767 = vmatpush1.bf16.xpose.msra.mxu0 0
  %768 = vmatprep.subr.bf16.mxu0 0
  %769 = vmatpush1.bf16.xpose.msra.mxu0 0
  %770 = vmatprep.subr.bf16.mxu0 0
  %771 = vmatpush1.bf16.xpose.msra.mxu0 0
  %772 = vmatprep.subr.bf16.mxu0 0
  %773 = vmatpush1.bf16.xpose.msra.mxu0 0
  %774 = vmatprep.subr.bf16.mxu0 0
  %775 = vmatpush1.bf16.xpose.msra.mxu0 0
  %776 = vmatprep.subr.bf16.mxu0 0
  %777 = vmatpush1.bf16.xpose.msra.mxu0 %v760
  %778 = vmatprep.subr.bf16.mxu0 0
  %779 = vmatpush2.bf16.xpose.msra.mxu0 0
  %780 = vmatprep.subr.bf16.mxu0 0
  %781 = vmatpush2.bf16.xpose.msra.mxu0 0
  %782 = vmatprep.subr.bf16.mxu0 0
  %783 = vmatpush2.bf16.xpose.msra.mxu0 0
  %784 = vmatprep.subr.bf16.mxu0 0
  %785 = vmatpush2.bf16.xpose.msra.mxu0 0
  %786 = vmatprep.subr.bf16.mxu0 0
  %787 = vmatpush2.bf16.xpose.msra.mxu0 0
  %788 = vmatprep.subr.bf16.mxu0 0
  %789 = vmatpush2.bf16.xpose.msra.mxu0 0
  %790 = vmatprep.subr.bf16.mxu0 0
  %791 = vmatpush2.bf16.xpose.msra.mxu0 0
  %792 = vmatprep.subr.bf16.mxu0 0
  %793 = vmatpush2.bf16.xpose.msra.mxu0 0
  %794 = vmatprep.mubr.bf16.mxu0 0
  %795 = vmatmul.mubr.bf16.gmra.mxu0 %v757
  %v796 = vpop.f32.mrf.mxu0
  %v797 = vadd.f32 %v195, %v796
  %v798 = vpop.f32.mrf.mxu0
  %v799 = vpop.f32.mrf.mxu0
  %v800 = vadd.f32 %v196, %v799
  %v801 = vpop.f32.mrf.mxu0
  %802 = vdwg.mxu0
  %v803 = vsel %vm314, %v797, -inf
  %804 = vmax.xlane.f32.xlu0 %v803
  %v805 = vpop.xlane.xlu0 %804
  %v806 = vsel %vm314, %v800, -inf
  %807 = vmax.xlane.f32.xlu0 %v806
  %v808 = vpop.xlane.xlu0 %807
  %v809 = vsub.f32 %v797, %v805
  %v810 = vsub.f32 %v800, %v808
  %v811 = vmul.f32 %v809, 1.442695
  %v812 = vpow.pop %v811
  %v813 = vmul.f32 %v810, 1.442695
  %v814 = vpow.pop %v813
  %v815 = vsel %vm314, %v812, 0.0
  %816 = vadd.xlane.f32.xlu0 %v815
  %v817 = vpop.xlane.xlu0 %816
  %v818 = vsel %vm314, %v814, 0.0
  %819 = vadd.xlane.f32.xlu0 %v818
  %v820 = vpop.xlane.xlu0 %819
  %v821 = vrcp.pop %v817
  %v822 = vrcp.pop %v820
  %v823 = vmul.f32 %v812, %v821
  %v824 = vmul.f32 %v814, %v822
  %v825 = vpack.c.bf16 %v824, %v823
  %826 = vrot.lane.b32.xlu0 %v752, 64
  %v827 = vpop.permute.xlu0 %826
  %v830 = vsel %vm314, %v825, 0
  %832 = vmatprep.subr.bf16.mxu0 0
  %833 = vmatpush1.bf16.msra.mxu0 0
  %834 = vmatprep.subr.bf16.mxu0 0
  %835 = vmatpush1.bf16.msra.mxu0 0
  %836 = vmatprep.subr.bf16.mxu0 0
  %837 = vmatpush1.bf16.msra.mxu0 0
  %838 = vmatprep.subr.bf16.mxu0 0
  %839 = vmatpush1.bf16.msra.mxu0 0
  %840 = vmatprep.subr.bf16.mxu0 0
  %841 = vmatpush1.bf16.msra.mxu0 0
  %842 = vmatprep.subr.bf16.mxu0 0
  %843 = vmatpush1.bf16.msra.mxu0 0
  %844 = vmatprep.subr.bf16.mxu0 0
  %845 = vmatpush1.bf16.msra.mxu0 0
  %846 = vmatprep.subr.bf16.mxu0 0
  %847 = vmatpush1.bf16.msra.mxu0 %v827
  %848 = vmatprep.subr.bf16.mxu0 0
  %849 = vmatpush2.bf16.msra.mxu0 0
  %850 = vmatprep.subr.bf16.mxu0 0
  %851 = vmatpush2.bf16.msra.mxu0 0
  %852 = vmatprep.subr.bf16.mxu0 0
  %853 = vmatpush2.bf16.msra.mxu0 0
  %854 = vmatprep.subr.bf16.mxu0 0
  %855 = vmatpush2.bf16.msra.mxu0 0
  %856 = vmatprep.subr.bf16.mxu0 0
  %857 = vmatpush2.bf16.msra.mxu0 0
  %858 = vmatprep.subr.bf16.mxu0 0
  %859 = vmatpush2.bf16.msra.mxu0 0
  %860 = vmatprep.subr.bf16.mxu0 0
  %861 = vmatpush2.bf16.msra.mxu0 0
  %862 = vmatprep.subr.bf16.mxu0 0
  %863 = vmatpush2.bf16.msra.mxu0 0
  %864 = vmatprep.mubr.bf16.mxu0 0
  %865 = vmatmul.mubr.bf16.gmra.mxu0 %v830
  %v866 = vpop.f32.mrf.mxu0
  %v867 = vadd.f32 0.0, %v866
  %v868 = vpop.f32.mrf.mxu0
  %v869 = vpop.f32.mrf.mxu0
  %v870 = vadd.f32 0.0, %v869
  %v871 = vpop.f32.mrf.mxu0
  %872 = vdwg.mxu0
  %v873 = vpack.c.bf16 %v870, %v867
  %874 = vrot.lane.b32.xlu0 %v704, 32
  %v875 = vpop.permute.xlu0 %874
  %876 = vrot.lane.b32.xlu0 %v705, 32
  %v877 = vpop.permute.xlu0 %876
  %881 = vrot.lane.b32.xlu0 %v695, 32
  %v882 = vpop.permute.xlu0 %881
  %v885 = vsel %vm140, %v873, 0
  %887 = vmatprep.subr.bf16.mxu0 0
  %888 = vmatpush1.bf16.msra.mxu0 0
  %889 = vmatprep.subr.bf16.mxu0 0
  %890 = vmatpush1.bf16.msra.mxu0 0
  %891 = vmatprep.subr.bf16.mxu0 0
  %892 = vmatpush1.bf16.msra.mxu0 0
  %893 = vmatprep.subr.bf16.mxu0 0
  %894 = vmatpush1.bf16.msra.mxu0 0
  %895 = vmatprep.subr.bf16.mxu0 0
  %896 = vmatpush1.bf16.msra.mxu0 0
  %897 = vmatprep.subr.bf16.mxu0 0
  %898 = vmatpush1.bf16.msra.mxu0 0
  %899 = vmatprep.subr.bf16.mxu0 0
  %900 = vmatpush1.bf16.msra.mxu0 %v877
  %901 = vmatprep.subr.bf16.mxu0 0
  %902 = vmatpush1.bf16.msra.mxu0 %v875
  %903 = vmatprep.subr.bf16.mxu0 0
  %904 = vmatpush2.bf16.msra.mxu0 0
  %905 = vmatprep.subr.bf16.mxu0 0
  %906 = vmatpush2.bf16.msra.mxu0 0
  %907 = vmatprep.subr.bf16.mxu0 0
  %908 = vmatpush2.bf16.msra.mxu0 0
  %909 = vmatprep.subr.bf16.mxu0 0
  %910 = vmatpush2.bf16.msra.mxu0 0
  %911 = vmatprep.subr.bf16.mxu0 0
  %912 = vmatpush2.bf16.msra.mxu0 0
  %913 = vmatprep.subr.bf16.mxu0 0
  %914 = vmatpush2.bf16.msra.mxu0 0
  %915 = vmatprep.subr.bf16.mxu0 0
  %916 = vmatpush2.bf16.msra.mxu0 0
  %917 = vmatprep.subr.bf16.mxu0 0
  %918 = vmatpush2.bf16.msra.mxu0 0
  %919 = vmatprep.mubr.bf16.mxu0 0
  %920 = vmatmul.mubr.bf16.gmra.mxu0 %v885
  %v921 = vpop.f32.mrf.mxu0
  %v922 = vadd.f32 %v882, %v921
  %v923 = vpop.f32.mrf.mxu0
  %v924 = vpop.f32.mrf.mxu0
  %v925 = vadd.f32 %v882, %v924
  %v926 = vpop.f32.mrf.mxu0
  %927 = vdwg.mxu0
  %v928 = vadd.f32 %v683, %v922
  %v929 = vadd.f32 %v684, %v925
  %v930 = vld [vmem:[%s6 + $0x4] sm:$0x1]
  %v931 = vsel %vm140, %v928, 0.0
  %932 = vadd.xlane.f32.xlu0 %v931
  %v933 = vpop.xlane.xlu0 %932
  %v934 = vsel %vm140, %v929, 0.0
  %935 = vadd.xlane.f32.xlu0 %v934
  %v936 = vpop.xlane.xlu0 %935
  %v937 = vmul.f32 %v933, %v147
  %v938 = vmul.f32 %v936, %v147
  %v939 = vsub.f32 %v928, %v937
  %v940 = vsub.f32 %v929, %v938
  %v941 = vmul.f32 %v939, %v939
  %v942 = vmul.f32 %v940, %v940
  %v943 = vsel %vm140, %v941, 0.0
  %944 = vadd.xlane.f32.xlu0 %v943
  %v945 = vpop.xlane.xlu0 %944
  %v946 = vsel %vm140, %v942, 0.0
  %947 = vadd.xlane.f32.xlu0 %v946
  %v948 = vpop.xlane.xlu0 %947
  %v949 = vmul.f32 %v945, %v147
  %v950 = vmul.f32 %v948, %v147
  %v951 = vadd.f32 %v949, 1e-12
  %v952 = vadd.f32 %v950, 1e-12
  %v953 = vrsqrt.pop %v951
  %v954 = vrsqrt.pop %v952
  %v955 = vmul.f32 %v939, %v953
  %v956 = vmul.f32 %v940, %v954
  %v957 = vlaneseq
  %v958 = vshrl.u32 %v957, 7
  %v959 = vsub.s32 0, %v958
  %v960 = vrot.slane %v930, %v959
  %v961 = vmul.f32 %v955, %v960
  %v962 = vmul.f32 %v956, %v960
  %964 = vrot.lane.b32.xlu0 %v960, 96
  %v965 = vpop.permute.xlu0 %964
  %v967 = vadd.f32 %v961, %v965
  %v968 = vadd.f32 %v962, %v965
  %s969 = scalar_lea.vmem %s4, 48
  %v970 = vld [vmem:[%s969] sm:$0xf]
  %v971 = vld [vmem:[%s969 + $0x4] sm:$0xf]
  %v972 = vld [vmem:[%s969 + $0x8] sm:$0xf]
  %v973 = vld [vmem:[%s969 + $0xc] sm:$0xf]
  %v974 = vld [vmem:[%s969 + $0x10] sm:$0xf]
  %v975 = vld [vmem:[%s969 + $0x14] sm:$0xf]
  %v976 = vld [vmem:[%s969 + $0x18] sm:$0xf]
  %v977 = vld [vmem:[%s969 + $0x1c] sm:$0xf]
  %v978 = vld [vmem:[%s969 + $0x20] sm:$0xf]
  %v979 = vld [vmem:[%s969 + $0x24] sm:$0xf]
  %v980 = vld [vmem:[%s969 + $0x28] sm:$0xf]
  %v981 = vld [vmem:[%s969 + $0x2c] sm:$0xf]
  %v982 = vpack.c.bf16 %v968, %v967
  %v983 = vld [vmem:[%s6 + $0x5] sm:$0x1]
  %v984 = vlaneseq
  %v985 = vshrl.u32 %v984, 7
  %v986 = vsub.s32 0, %v985
  %v987 = vrot.slane %v983, %v986
  %v992 = vunpack.c.l.b16 %v970
  %v993 = vunpack.c.l.b16 %v971
  %v994 = vunpack.c.l.b16 %v972
  %v995 = vunpack.c.l.b16 %v973
  %v996 = vpack.c.b16 %v993, %v992
  %v997 = vpack.c.b16 %v995, %v994
  %v1001 = vsel %vm140, %v982, 0
  %1003 = vmatprep.subr.bf16.mxu0 0
  %1004 = vmatpush1.bf16.msra.mxu0 0
  %1005 = vmatprep.subr.bf16.mxu0 0
  %1006 = vmatpush1.bf16.msra.mxu0 0
  %1007 = vmatprep.subr.bf16.mxu0 0
  %1008 = vmatpush1.bf16.msra.mxu0 0
  %1009 = vmatprep.subr.bf16.mxu0 0
  %1010 = vmatpush1.bf16.msra.mxu0 0
  %1011 = vmatprep.subr.bf16.mxu0 0
  %1012 = vmatpush1.bf16.msra.mxu0 0
  %1013 = vmatprep.subr.bf16.mxu0 0
  %1014 = vmatpush1.bf16.msra.mxu0 0
  %1015 = vmatprep.subr.bf16.mxu0 0
  %1016 = vmatpush1.bf16.msra.mxu0 %v997
  %1017 = vmatprep.subr.bf16.mxu0 0
  %1018 = vmatpush1.bf16.msra.mxu0 %v996
  %1019 = vmatprep.subr.bf16.mxu0 0
  %1020 = vmatpush2.bf16.msra.mxu0 0
  %1021 = vmatprep.subr.bf16.mxu0 0
  %1022 = vmatpush2.bf16.msra.mxu0 0
  %1023 = vmatprep.subr.bf16.mxu0 0
  %1024 = vmatpush2.bf16.msra.mxu0 0
  %1025 = vmatprep.subr.bf16.mxu0 0
  %1026 = vmatpush2.bf16.msra.mxu0 0
  %1027 = vmatprep.subr.bf16.mxu0 0
  %1028 = vmatpush2.bf16.msra.mxu0 0
  %1029 = vmatprep.subr.bf16.mxu0 0
  %1030 = vmatpush2.bf16.msra.mxu0 0
  %1031 = vmatprep.subr.bf16.mxu0 0
  %1032 = vmatpush2.bf16.msra.mxu0 0
  %1033 = vmatprep.subr.bf16.mxu0 0
  %1034 = vmatpush2.bf16.msra.mxu0 0
  %1035 = vmatprep.mubr.bf16.mxu0 0
  %1036 = vmatmul.mubr.bf16.gmra.mxu0 %v1001
  %v1037 = vpop.f32.mrf.mxu0
  %v1038 = vadd.f32 %v987, %v1037
  %v1039 = vpop.f32.mrf.mxu0
  %v1040 = vpop.f32.mrf.mxu0
  %v1041 = vadd.f32 %v987, %v1040
  %v1042 = vpop.f32.mrf.mxu0
  %1043 = vdwg.mxu0
  %v1044 = vmul.f32 %v1038, 0.5
  %v1045 = vmul.f32 %v1041, 0.5
  %v1046 = vmul.f32 %v1038, 0.044715
  %v1047 = vmul.f32 %v1041, 0.044715
  %v1048 = vmul.f32 %v1046, %v1038
  %v1049 = vmul.f32 %v1047, %v1041
  %v1050 = vmul.f32 %v1048, %v1038
  %v1051 = vmul.f32 %v1049, %v1041
  %v1052 = vadd.f32 %v1038, %v1050
  %v1053 = vadd.f32 %v1041, %v1051
  %v1054 = vmul.f32 %v1052, 0.7978846
  %v1055 = vmul.f32 %v1053, 0.7978846
  %v1056 = vtanh.pop %v1054
  %v1057 = vtanh.pop %v1055
  %v1058 = vadd.f32 %v1056, 1.0
  %v1059 = vadd.f32 %v1057, 1.0
  %v1060 = vmul.f32 %v1044, %v1058
  %v1061 = vmul.f32 %v1045, %v1059
  %v1062 = vpack.c.bf16 %v1061, %v1060
  %v1071 = vunpack.c.l.b16 %v974
  %v1072 = vunpack.c.l.b16 %v975
  %v1073 = vunpack.c.l.b16 %v976
  %v1074 = vunpack.c.l.b16 %v977
  %v1075 = vunpack.c.l.b16 %v978
  %v1076 = vunpack.c.l.b16 %v979
  %v1077 = vunpack.c.l.b16 %v980
  %v1078 = vunpack.c.l.b16 %v981
  %v1079 = vpack.c.b16 %v1072, %v1071
  %v1080 = vpack.c.b16 %v1074, %v1073
  %v1081 = vpack.c.b16 %v1076, %v1075
  %v1082 = vpack.c.b16 %v1078, %v1077
  %1088 = vrot.lane.b32.xlu0 %v987, 64
  %v1089 = vpop.permute.xlu0 %1088
  %v1092 = vsel %vm602, %v1062, 0
  %1094 = vmatprep.subr.bf16.mxu0 0
  %1095 = vmatpush1.bf16.msra.mxu0 0
  %1096 = vmatprep.subr.bf16.mxu0 0
  %1097 = vmatpush1.bf16.msra.mxu0 0
  %1098 = vmatprep.subr.bf16.mxu0 0
  %1099 = vmatpush1.bf16.msra.mxu0 0
  %1100 = vmatprep.subr.bf16.mxu0 0
  %1101 = vmatpush1.bf16.msra.mxu0 0
  %1102 = vmatprep.subr.bf16.mxu0 0
  %1103 = vmatpush1.bf16.msra.mxu0 %v1082
  %1104 = vmatprep.subr.bf16.mxu0 0
  %1105 = vmatpush1.bf16.msra.mxu0 %v1081
  %1106 = vmatprep.subr.bf16.mxu0 0
  %1107 = vmatpush1.bf16.msra.mxu0 %v1080
  %1108 = vmatprep.subr.bf16.mxu0 0
  %1109 = vmatpush1.bf16.msra.mxu0 %v1079
  %1110 = vmatprep.subr.bf16.mxu0 0
  %1111 = vmatpush2.bf16.msra.mxu0 0
  %1112 = vmatprep.subr.bf16.mxu0 0
  %1113 = vmatpush2.bf16.msra.mxu0 0
  %1114 = vmatprep.subr.bf16.mxu0 0
  %1115 = vmatpush2.bf16.msra.mxu0 0
  %1116 = vmatprep.subr.bf16.mxu0 0
  %1117 = vmatpush2.bf16.msra.mxu0 0
  %1118 = vmatprep.subr.bf16.mxu0 0
  %1119 = vmatpush2.bf16.msra.mxu0 0
  %1120 = vmatprep.subr.bf16.mxu0 0
  %1121 = vmatpush2.bf16.msra.mxu0 0
  %1122 = vmatprep.subr.bf16.mxu0 0
  %1123 = vmatpush2.bf16.msra.mxu0 0
  %1124 = vmatprep.subr.bf16.mxu0 0
  %1125 = vmatpush2.bf16.msra.mxu0 0
  %1126 = vmatprep.mubr.bf16.mxu0 0
  %1127 = vmatmul.mubr.bf16.gmra.mxu0 %v1092
  %v1128 = vpop.f32.mrf.mxu0
  %v1129 = vadd.f32 %v1089, %v1128
  %v1130 = vpop.f32.mrf.mxu0
  %v1131 = vpop.f32.mrf.mxu0
  %v1132 = vadd.f32 %v1089, %v1131
  %v1133 = vpop.f32.mrf.mxu0
  %1134 = vdwg.mxu0
  %v1135 = vadd.f32 %v967, %v1129
  %v1136 = vadd.f32 %v968, %v1132
  %v1137 = vsel %vm140, %v1135, 0.0
  %1138 = vadd.xlane.f32.xlu0 %v1137
  %v1139 = vpop.xlane.xlu0 %1138
  %v1140 = vsel %vm140, %v1136, 0.0
  %1141 = vadd.xlane.f32.xlu0 %v1140
  %v1142 = vpop.xlane.xlu0 %1141
  %v1143 = vmul.f32 %v1139, %v147
  %v1144 = vmul.f32 %v1142, %v147
  %v1145 = vsub.f32 %v1135, %v1143
  %v1146 = vsub.f32 %v1136, %v1144
  %v1147 = vmul.f32 %v1145, %v1145
  %v1148 = vmul.f32 %v1146, %v1146
  %v1149 = vsel %vm140, %v1147, 0.0
  %1150 = vadd.xlane.f32.xlu0 %v1149
  %v1151 = vpop.xlane.xlu0 %1150
  %v1152 = vsel %vm140, %v1148, 0.0
  %1153 = vadd.xlane.f32.xlu0 %v1152
  %v1154 = vpop.xlane.xlu0 %1153
  %v1155 = vmul.f32 %v1151, %v147
  %v1156 = vmul.f32 %v1154, %v147
  %v1157 = vadd.f32 %v1155, 1e-12
  %v1158 = vadd.f32 %v1156, 1e-12
  %v1159 = vrsqrt.pop %v1157
  %v1160 = vrsqrt.pop %v1158
  %v1161 = vmul.f32 %v1145, %v1159
  %v1162 = vmul.f32 %v1146, %v1160
  %1163 = vrot.lane.b32.xlu0 %v960, 64
  %v1164 = vpop.permute.xlu0 %1163
  %v1166 = vmul.f32 %v1161, %v1164
  %v1167 = vmul.f32 %v1162, %v1164
  %1168 = vrot.lane.b32.xlu0 %v960, 32
  %v1169 = vpop.permute.xlu0 %1168
  %v1171 = vadd.f32 %v1166, %v1169
  %v1172 = vadd.f32 %v1167, %v1169
  %v1173 = vmul.u32 %v31, 8
  %vm1174 = vcmp.eq.s32.totalorder %v29, %v1173
  %v1175 = vsel %vm1174, 1.0, 0.0
  %v1176 = vpack.c.bf16 %v1175, %v1175
  %v1177 = vpack.c.bf16 %v1172, %v1171
  %v1179 = vsel %vm314, %v1176, 0
  %1181 = vmatprep.subr.bf16.mxu0 0
  %1182 = vmatpush1.bf16.msra.mxu0 0
  %1183 = vmatprep.subr.bf16.mxu0 0
  %1184 = vmatpush1.bf16.msra.mxu0 0
  %1185 = vmatprep.subr.bf16.mxu0 0
  %1186 = vmatpush1.bf16.msra.mxu0 0
  %1187 = vmatprep.subr.bf16.mxu0 0
  %1188 = vmatpush1.bf16.msra.mxu0 0
  %1189 = vmatprep.subr.bf16.mxu0 0
  %1190 = vmatpush1.bf16.msra.mxu0 0
  %1191 = vmatprep.subr.bf16.mxu0 0
  %1192 = vmatpush1.bf16.msra.mxu0 0
  %1193 = vmatprep.subr.bf16.mxu0 0
  %1194 = vmatpush1.bf16.msra.mxu0 0
  %1195 = vmatprep.subr.bf16.mxu0 0
  %1196 = vmatpush1.bf16.msra.mxu0 %v1177
  %1197 = vmatprep.subr.bf16.mxu0 0
  %1198 = vmatpush2.bf16.msra.mxu0 0
  %1199 = vmatprep.subr.bf16.mxu0 0
  %1200 = vmatpush2.bf16.msra.mxu0 0
  %1201 = vmatprep.subr.bf16.mxu0 0
  %1202 = vmatpush2.bf16.msra.mxu0 0
  %1203 = vmatprep.subr.bf16.mxu0 0
  %1204 = vmatpush2.bf16.msra.mxu0 0
  %1205 = vmatprep.subr.bf16.mxu0 0
  %1206 = vmatpush2.bf16.msra.mxu0 0
  %1207 = vmatprep.subr.bf16.mxu0 0
  %1208 = vmatpush2.bf16.msra.mxu0 0
  %1209 = vmatprep.subr.bf16.mxu0 0
  %1210 = vmatpush2.bf16.msra.mxu0 0
  %1211 = vmatprep.subr.bf16.mxu0 0
  %1212 = vmatpush2.bf16.msra.mxu0 0
  %1213 = vmatprep.mubr.bf16.mxu0 0
  %1214 = vmatmul.mubr.bf16.gmra.mxu0 %v1179
  %v1215 = vpop.f32.mrf.mxu0
  %v1216 = vadd.f32 0.0, %v1215
  %v1217 = vpop.f32.mrf.mxu0
  %v1218 = vpop.f32.mrf.mxu0
  %v1219 = vpop.f32.mrf.mxu0
  %1220 = vdwg.mxu0
  %v1221 = vld [vmem:[%s5] sm:$0xf]
  %v1222 = vld [vmem:[%s5 + $0x4] sm:$0xf]
  %v1223 = vld [vmem:[%s5 + $0x8] sm:$0xf]
  %v1224 = vld [vmem:[%s5 + $0xc] sm:$0xf]
  %v1225 = vld [vmem:[%s6 + $0x7] sm:$0x1]
  %v1226 = vpack.c.bf16 %v1216, %v1216
  %v1231 = vunpack.c.l.b16 %v1221
  %v1232 = vunpack.c.l.b16 %v1222
  %v1233 = vunpack.c.l.b16 %v1223
  %v1234 = vunpack.c.l.b16 %v1224
  %v1235 = vpack.c.b16 %v1232, %v1231
  %v1236 = vpack.c.b16 %v1234, %v1233
  %1239 = vrot.lane.b32.xlu0 %v171, 64
  %v1240 = vpop.permute.xlu0 %1239
  %v1243 = vsel %vm140, %v1226, 0
  %1245 = vmatprep.subr.bf16.mxu0 0
  %1246 = vmatpush1.bf16.msra.mxu0 0
  %1247 = vmatprep.subr.bf16.mxu0 0
  %1248 = vmatpush1.bf16.msra.mxu0 0
  %1249 = vmatprep.subr.bf16.mxu0 0
  %1250 = vmatpush1.bf16.msra.mxu0 0
  %1251 = vmatprep.subr.bf16.mxu0 0
  %1252 = vmatpush1.bf16.msra.mxu0 0
  %1253 = vmatprep.subr.bf16.mxu0 0
  %1254 = vmatpush1.bf16.msra.mxu0 0
  %1255 = vmatprep.subr.bf16.mxu0 0
  %1256 = vmatpush1.bf16.msra.mxu0 0
  %1257 = vmatprep.subr.bf16.mxu0 0
  %1258 = vmatpush1.bf16.msra.mxu0 %v1236
  %1259 = vmatprep.subr.bf16.mxu0 0
  %1260 = vmatpush1.bf16.msra.mxu0 %v1235
  %1261 = vmatprep.subr.bf16.mxu0 0
  %1262 = vmatpush2.bf16.msra.mxu0 0
  %1263 = vmatprep.subr.bf16.mxu0 0
  %1264 = vmatpush2.bf16.msra.mxu0 0
  %1265 = vmatprep.subr.bf16.mxu0 0
  %1266 = vmatpush2.bf16.msra.mxu0 0
  %1267 = vmatprep.subr.bf16.mxu0 0
  %1268 = vmatpush2.bf16.msra.mxu0 0
  %1269 = vmatprep.subr.bf16.mxu0 0
  %1270 = vmatpush2.bf16.msra.mxu0 0
  %1271 = vmatprep.subr.bf16.mxu0 0
  %1272 = vmatpush2.bf16.msra.mxu0 0
  %1273 = vmatprep.subr.bf16.mxu0 0
  %1274 = vmatpush2.bf16.msra.mxu0 0
  %1275 = vmatprep.subr.bf16.mxu0 0
  %1276 = vmatpush2.bf16.msra.mxu0 0
  %1277 = vmatprep.mubr.bf16.mxu0 0
  %1278 = vmatmul.mubr.bf16.gmra.mxu0 %v1243
  %v1279 = vpop.f32.mrf.mxu0
  %v1280 = vadd.f32 %v1240, %v1279
  %v1281 = vpop.f32.mrf.mxu0
  %v1282 = vpop.f32.mrf.mxu0
  %v1283 = vpop.f32.mrf.mxu0
  %1284 = vdwg.mxu0
  %v1285 = vtanh.pop %v1280
  %v1286 = vpack.c.bf16 %v1285, %v1285
  %v1287 = vlaneseq
  %v1288 = vshrl.u32 %v1287, 7
  %v1289 = vsub.s32 0, %v1288
  %v1290 = vrot.slane %v1225, %v1289
  %1291 = vrot.lane.b32.xlu0 %v1235, 96
  %v1292 = vpop.permute.xlu0 %1291
  %1293 = vrot.lane.b32.xlu0 %v1236, 96
  %v1294 = vpop.permute.xlu0 %1293
  %v1298 = vsel %vm140, %v1286, 0
  %1300 = vmatprep.subr.bf16.mxu0 0
  %1301 = vmatpush1.bf16.msra.mxu0 0
  %1302 = vmatprep.subr.bf16.mxu0 0
  %1303 = vmatpush1.bf16.msra.mxu0 0
  %1304 = vmatprep.subr.bf16.mxu0 0
  %1305 = vmatpush1.bf16.msra.mxu0 0
  %1306 = vmatprep.subr.bf16.mxu0 0
  %1307 = vmatpush1.bf16.msra.mxu0 0
  %1308 = vmatprep.subr.bf16.mxu0 0
  %1309 = vmatpush1.bf16.msra.mxu0 0
  %1310 = vmatprep.subr.bf16.mxu0 0
  %1311 = vmatpush1.bf16.msra.mxu0 0
  %1312 = vmatprep.subr.bf16.mxu0 0
  %1313 = vmatpush1.bf16.msra.mxu0 %v1294
  %1314 = vmatprep.subr.bf16.mxu0 0
  %1315 = vmatpush1.bf16.msra.mxu0 %v1292
  %1316 = vmatprep.subr.bf16.mxu0 0
  %1317 = vmatpush2.bf16.msra.mxu0 0
  %1318 = vmatprep.subr.bf16.mxu0 0
  %1319 = vmatpush2.bf16.msra.mxu0 0
  %1320 = vmatprep.subr.bf16.mxu0 0
  %1321 = vmatpush2.bf16.msra.mxu0 0
  %1322 = vmatprep.subr.bf16.mxu0 0
  %1323 = vmatpush2.bf16.msra.mxu0 0
  %1324 = vmatprep.subr.bf16.mxu0 0
  %1325 = vmatpush2.bf16.msra.mxu0 0
  %1326 = vmatprep.subr.bf16.mxu0 0
  %1327 = vmatpush2.bf16.msra.mxu0 0
  %1328 = vmatprep.subr.bf16.mxu0 0
  %1329 = vmatpush2.bf16.msra.mxu0 0
  %1330 = vmatprep.subr.bf16.mxu0 0
  %1331 = vmatpush2.bf16.msra.mxu0 0
  %1332 = vmatprep.mubr.bf16.mxu0 0
  %1333 = vmatmul.mubr.bf16.gmra.mxu0 %v1298
  %v1334 = vpop.f32.mrf.mxu0
  %v1335 = vadd.f32 %v1290, %v1334
  %v1336 = vpop.f32.mrf.mxu0
  %v1337 = vpop.f32.mrf.mxu0
  %v1338 = vpop.f32.mrf.mxu0
  %1339 = vdwg.mxu0
  %v1340 = vmax.f32 %v1335, 0.0
  %v1341 = vpack.c.bf16 %v1340, %v1340
  %1342 = vrot.lane.b32.xlu0 %v1235, 64
  %v1343 = vpop.permute.xlu0 %1342
  %1344 = vrot.lane.b32.xlu0 %v1236, 64
  %v1345 = vpop.permute.xlu0 %1344
  %1349 = vrot.lane.b32.xlu0 %v1290, 96
  %v1350 = vpop.permute.xlu0 %1349
  %v1353 = vsel %vm140, %v1341, 0
  %1355 = vmatprep.subr.bf16.mxu0 0
  %1356 = vmatpush1.bf16.msra.mxu0 0
  %1357 = vmatprep.subr.bf16.mxu0 0
  %1358 = vmatpush1.bf16.msra.mxu0 0
  %1359 = vmatprep.subr.bf16.mxu0 0
  %1360 = vmatpush1.bf16.msra.mxu0 0
  %1361 = vmatprep.subr.bf16.mxu0 0
  %1362 = vmatpush1.bf16.msra.mxu0 0
  %1363 = vmatprep.subr.bf16.mxu0 0
  %1364 = vmatpush1.bf16.msra.mxu0 0
  %1365 = vmatprep.subr.bf16.mxu0 0
  %1366 = vmatpush1.bf16.msra.mxu0 0
  %1367 = vmatprep.subr.bf16.mxu0 0
  %1368 = vmatpush1.bf16.msra.mxu0 %v1345
  %1369 = vmatprep.subr.bf16.mxu0 0
  %1370 = vmatpush1.bf16.msra.mxu0 %v1343
  %1371 = vmatprep.subr.bf16.mxu0 0
  %1372 = vmatpush2.bf16.msra.mxu0 0
  %1373 = vmatprep.subr.bf16.mxu0 0
  %1374 = vmatpush2.bf16.msra.mxu0 0
  %1375 = vmatprep.subr.bf16.mxu0 0
  %1376 = vmatpush2.bf16.msra.mxu0 0
  %1377 = vmatprep.subr.bf16.mxu0 0
  %1378 = vmatpush2.bf16.msra.mxu0 0
  %1379 = vmatprep.subr.bf16.mxu0 0
  %1380 = vmatpush2.bf16.msra.mxu0 0
  %1381 = vmatprep.subr.bf16.mxu0 0
  %1382 = vmatpush2.bf16.msra.mxu0 0
  %1383 = vmatprep.subr.bf16.mxu0 0
  %1384 = vmatpush2.bf16.msra.mxu0 0
  %1385 = vmatprep.subr.bf16.mxu0 0
  %1386 = vmatpush2.bf16.msra.mxu0 0
  %1387 = vmatprep.mubr.bf16.mxu0 0
  %1388 = vmatmul.mubr.bf16.gmra.mxu0 %v1353
  %v1389 = vpop.f32.mrf.mxu0
  %v1390 = vadd.f32 %v1350, %v1389
  %v1391 = vpop.f32.mrf.mxu0
  %v1392 = vpop.f32.mrf.mxu0
  %v1393 = vpop.f32.mrf.mxu0
  %1394 = vdwg.mxu0
  %vm1395 = vcmask 74752
  %v1396 = vsel %vm1395, %v1390, -inf
  %1397 = vmax.xlane.f32.xlu0 %v1396
  %v1398 = vpop.xlane.xlu0 %1397
  %v1399 = vsub.f32 %v1390, %v1398
  %v1400 = vmul.f32 %v1399, 1.442695
  %v1401 = vpow.pop %v1400
  %v1402 = vsel %vm1395, %v1401, 0.0
  %1403 = vadd.xlane.f32.xlu0 %v1402
  %v1404 = vpop.xlane.xlu0 %1403
  %v1405 = vrcp.pop %v1404
  %v1406 = vmul.f32 %v1401, %v1405
  %v1407 = vsub.f32 0.0, %v1390
  %v1408 = vmul.f32 %v1407, 1.442695
  %v1409 = vpow.pop %v1408
  %v1410 = vadd.f32 %v1409, 1.0
  %v1411 = vrcp.pop %v1410
  %v1412 = vmul.f32 1.0, %v1411
  %1413 = vst.msk [vmem:[%s7] sm:$0x3] %vm1395, %v1406
  %vm1414 = vcmask 83024
  %1415 = vst.msk [vmem:[%s7] sm:$0x3] %vm1414, %v1412
  %1417 = vrot.lane.b32.xlu0 %v1285, 11
  %v1418 = vpop.permute.xlu0 %1417
  %vm1420 = vcmask 345176
  %1421 = vst.msk [vmem:[%s7] sm:$0x3] %vm1420, %v1418
  // Predicated region
  $region30: #{behavior_analyzer_forward.1} parent=0 // pred_check
    _
  $region31: #{behavior_analyzer_forward.1} parent=0 // pred_check_branch
    %1423 = sbr.rel (0) target = $region33
  $region32: #{behavior_analyzer_forward.1} parent=0 // pred_region
    _
  $region33: #{behavior_analyzer_forward.1} parent=0 // pred_fallthru
    _
  // Predicated region
  $region34: #{behavior_analyzer_forward.1} parent=0 // pred_check
    _
  $region35: #{behavior_analyzer_forward.1} parent=0 // pred_check_branch
    %1425 = sbr.rel (0) target = $region37
  $region36: #{behavior_analyzer_forward.1} parent=0 // pred_region
    _
  $region37: #{behavior_analyzer_forward.1} parent=0 // pred_fallthru
    _

</llo_original>
